<compile_context>
chip_gen: v5e
topology: v5e:2x2
jax: 0.10.0
libtpu: 0.0.40
codegen_flags: <defaults>
</compile_context>

<pallas_src>
import math

import jax
import jax.numpy as jnp
from jax.experimental import pallas as pl
from jax.experimental.pallas import tpu as pltpu


def _round_up(x, m):
    return ((x + m - 1) // m) * m


def _cdiv(a, b):
    return -(-a // b)


def _choose_batch_tile(batch, max_tile):
    """Batch tile: multiple of 8 (f32 sublane), >=2 grid tiles when possible
    (v7x has 2 TensorCores), and never a mostly-padded last tile."""
    b8 = _round_up(batch, 8)
    tb = min(_round_up(max_tile, 8), b8)
    if b8 // tb < 2 and b8 >= 16:                      # give both v7x TCs work
        tb = _round_up(_cdiv(b8, 2), 8)
    while tb > 8 and (_round_up(b8, tb) - b8) * 2 >= tb:   # cap padded waste
        tb = _round_up(_cdiv(tb, 2), 8)
    return tb


def _make_fused_mlp_kernel(num_layers):
    """Kernel over refs: (x, w0, b0, w1, b1, ..., w{L-1}, b{L-1}, out)."""

    def kernel(*refs):
        x_ref, o_ref = refs[0], refs[-1]
        h = x_ref[...]                           # f32 (TB, P_in)
        for l in range(num_layers):              # unrolled: one MXU pass/layer
            w_ref = refs[1 + 2 * l]              # bf16 (Pk, Pn), VMEM-resident
            b_ref = refs[2 + 2 * l]              # f32  (1,  Pn)
            y = jnp.dot(h.astype(jnp.bfloat16), w_ref[...],
                        preferred_element_type=jnp.float32)
            h = jnp.maximum(y + b_ref[...], 0.0)  # bias + ReLU in f32
        o_ref[...] = h.astype(o_ref.dtype)

    return kernel


def pack_autoencoder_params(params):
    """One-time packing: per-layer zero-pad to (8,128)-aligned tiles, weights
    in bf16 (MXU dtype), biases in f32.  Zero padding is exact: padded weight
    columns / bias lanes are 0, so padded activation lanes stay exactly 0
    through ReLU at every layer."""
    packed = []
    for (w, b) in params:
        din, dout = w.shape
        pk, pn = _round_up(din, 128), _round_up(dout, 128)
        w_p = jnp.zeros((pk, pn), jnp.bfloat16).at[:din, :dout].set(
            w.astype(jnp.bfloat16))
        b_p = jnp.zeros((1, pn), jnp.float32).at[:, :dout].set(
            b.astype(jnp.float32))
        packed.append((w_p, b_p))
    return packed


def autoencoder_forward(x, packed_params, *, out_dim, max_batch_tile=512,
                        single_buffer_weights=True):
    """Fused forward pass: the whole Linear+ReLU stack in ONE pallas_call."""
    batch, din0 = x.shape
    num_layers = len(packed_params)
    p_in = packed_params[0][0].shape[0]
    p_out = packed_params[-1][0].shape[1]

    tb = _choose_batch_tile(batch, max_batch_tile)
    b_pad = _round_up(batch, tb)

    x_pad = jnp.pad(x.astype(jnp.float32),
                    ((0, b_pad - batch), (0, p_in - din0)))

    # Constant-index (resident) weights/biases: single-buffer when supported.
    weight_kwargs = (dict(pipeline_mode=pl.Buffered(1))
                     if single_buffer_weights else {})

    in_specs = [pl.BlockSpec((tb, p_in), lambda i: (i, 0))]
    flat_args = [x_pad]
    for (w_p, b_p) in packed_params:
        pk, pn = w_p.shape
        in_specs.append(pl.BlockSpec((pk, pn), lambda i: (0, 0),
                                     **weight_kwargs))
        in_specs.append(pl.BlockSpec((1, pn), lambda i: (0, 0),
                                     **weight_kwargs))
        flat_args += [w_p, b_p]

    # VMEM budget + cost estimate.
    w_bytes = sum(w.size * w.dtype.itemsize for (w, _) in packed_params)
    b_bytes = sum(b.size * b.dtype.itemsize for (_, b) in packed_params)
    max_pn = max(w.shape[1] for (w, _) in packed_params)
    param_bytes = (1 if single_buffer_weights else 2) * (w_bytes + b_bytes)
    io_bytes = 2 * tb * (p_in + p_out) * 4       # double-buffered x / out tiles
    act_bytes = 2 * tb * max_pn * 4              # live activation + matmul out
    vmem_limit = int(min(max((param_bytes + io_bytes + act_bytes) * 3 // 2,
                             16 << 20), 100 << 20))

    flops = 2 * b_pad * sum(w.shape[0] * w.shape[1]
                            for (w, _) in packed_params)
    bytes_accessed = int(x_pad.size * 4 + w_bytes + b_bytes + b_pad * p_out * 4)

    out = pl.pallas_call(
        _make_fused_mlp_kernel(num_layers),
        out_shape=jax.ShapeDtypeStruct((b_pad, p_out), jnp.float32),
        grid_spec=pltpu.PrefetchScalarGridSpec(
            num_scalar_prefetch=0,
            grid=(b_pad // tb,),
            in_specs=in_specs,
            out_specs=pl.BlockSpec((tb, p_out), lambda i: (i, 0)),
        ),
        compiler_params=pltpu.CompilerParams(
            dimension_semantics=("parallel",),
            vmem_limit_bytes=vmem_limit,
        ),
        cost_estimate=pl.CostEstimate(
            flops=flops, transcendentals=0, bytes_accessed=bytes_accessed),
    )(*flat_args)

    return out[:batch, :out_dim]


def make_autoencoder_params(key, input_size, first_hidden_dim, depth=3):
    """Parameter init mirroring the PyTorch module's layer shapes.

    Uses PyTorch's default nn.Linear init: U(-1/sqrt(fan_in), 1/sqrt(fan_in)).
    Weights stored as (in_features, out_features) so the kernel does x @ W + b.
    """
    assert depth >= 1, "Depth must be at least 1"

    # Encoder layer sizes.
    layer_dims = [(input_size, first_hidden_dim)]
    cur = first_hidden_dim
    for _ in range(depth - 1):
        nxt = cur // 2
        layer_dims.append((cur, nxt))
        cur = nxt
    # Decoder layer sizes.
    while cur < first_hidden_dim:
        nxt = cur * 2
        layer_dims.append((cur, nxt))
        cur = nxt
    layer_dims.append((cur, input_size))

    params = []
    for (din, dout) in layer_dims:
        key, kw, kb = jax.random.split(key, 3)
        bound = 1.0 / math.sqrt(din)
        w = jax.random.uniform(kw, (din, dout), jnp.float32, -bound, bound)
        b = jax.random.uniform(kb, (1, dout), jnp.float32, -bound, bound)
        params.append((w, b))
    return params


def autoencoder_forward_ref(x, params):
    """Plain-JAX reference with matching precision (bf16 matmul, f32 accum)."""
    h = x.astype(jnp.float32)
    for (w, b) in params:
        y = jnp.dot(h.astype(jnp.bfloat16), w.astype(jnp.bfloat16),
                    preferred_element_type=jnp.float32)
        h = jnp.maximum(y + b, 0.0)
    return h


if __name__ == "__main__":
    # Small shapes consistent with the module: Linear layers over a flat dim.
    batch = 8
    input_size = 64
    first_hidden_dim = 32
    depth = 3  # encoder: 64->32->16->8 ; decoder: 8->16->32->64 (all ReLU)

    key = jax.random.PRNGKey(0)
    key_x, key_p = jax.random.split(key)
    x = jax.random.normal(key_x, (batch, input_size), jnp.float32)
    params = make_autoencoder_params(key_p, input_size, first_hidden_dim, depth)

    packed = pack_autoencoder_params(params)   # one-time packing, off hot path

    fwd = jax.jit(autoencoder_forward,
                  static_argnames=("out_dim", "max_batch_tile",
                                   "single_buffer_weights"))
    try:
        out = jax.block_until_ready(fwd(x, packed, out_dim=input_size))
    except Exception:
        # Fallback for jax versions that reject single-buffering (Buffered(1)).
        out = jax.block_until_ready(
            fwd(x, packed, out_dim=input_size, single_buffer_weights=False))

    ref = autoencoder_forward_ref(x, params)
    assert out.shape == (batch, input_size), out.shape
    assert jnp.allclose(out, ref, atol=1e-4, rtol=1e-4), (
        "mismatch vs reference, max abs err = "
        f"{float(jnp.max(jnp.abs(out - ref)))}")

    print("KERNEL_OK")
</pallas_src>

<mosaic_0001>
module attributes {stable_mosaic.version = 11 : i64} {
  func.func @kernel(%arg0: i32, %arg1: memref<8x128xf32, #tpu.memory_space<vmem>>, %arg2: memref<128x128xbf16, #tpu.memory_space<vmem>>, %arg3: memref<1x128xf32, #tpu.memory_space<vmem>>, %arg4: memref<128x128xbf16, #tpu.memory_space<vmem>>, %arg5: memref<1x128xf32, #tpu.memory_space<vmem>>, %arg6: memref<128x128xbf16, #tpu.memory_space<vmem>>, %arg7: memref<1x128xf32, #tpu.memory_space<vmem>>, %arg8: memref<128x128xbf16, #tpu.memory_space<vmem>>, %arg9: memref<1x128xf32, #tpu.memory_space<vmem>>, %arg10: memref<128x128xbf16, #tpu.memory_space<vmem>>, %arg11: memref<1x128xf32, #tpu.memory_space<vmem>>, %arg12: memref<128x128xbf16, #tpu.memory_space<vmem>>, %arg13: memref<1x128xf32, #tpu.memory_space<vmem>>, %arg14: memref<8x128xf32, #tpu.memory_space<vmem>>) attributes {dimension_semantics = [#tpu.dimension_semantics<parallel>], iteration_bounds = array<i64: 1>, scalar_prefetch = 0 : i64, scratch_operands = 0 : i64, tpu.core_type = #tpu.core_type<tc>, window_params = [{transform_indices = @transform_0, window_bounds = array<i64: 8, 128>}, {pipeline_mode = #tpu.pipeline_mode<synchronous>, transform_indices = @transform_1, window_bounds = array<i64: 128, 128>}, {pipeline_mode = #tpu.pipeline_mode<synchronous>, transform_indices = @transform_2, window_bounds = array<i64: 1, 128>}, {pipeline_mode = #tpu.pipeline_mode<synchronous>, transform_indices = @transform_3, window_bounds = array<i64: 128, 128>}, {pipeline_mode = #tpu.pipeline_mode<synchronous>, transform_indices = @transform_4, window_bounds = array<i64: 1, 128>}, {pipeline_mode = #tpu.pipeline_mode<synchronous>, transform_indices = @transform_5, window_bounds = array<i64: 128, 128>}, {pipeline_mode = #tpu.pipeline_mode<synchronous>, transform_indices = @transform_6, window_bounds = array<i64: 1, 128>}, {pipeline_mode = #tpu.pipeline_mode<synchronous>, transform_indices = @transform_7, window_bounds = array<i64: 128, 128>}, {pipeline_mode = #tpu.pipeline_mode<synchronous>, transform_indices = @transform_8, window_bounds = array<i64: 1, 128>}, {pipeline_mode = #tpu.pipeline_mode<synchronous>, transform_indices = @transform_9, window_bounds = array<i64: 128, 128>}, {pipeline_mode = #tpu.pipeline_mode<synchronous>, transform_indices = @transform_10, window_bounds = array<i64: 1, 128>}, {pipeline_mode = #tpu.pipeline_mode<synchronous>, transform_indices = @transform_11, window_bounds = array<i64: 128, 128>}, {pipeline_mode = #tpu.pipeline_mode<synchronous>, transform_indices = @transform_12, window_bounds = array<i64: 1, 128>}, {transform_indices = @transform_13, window_bounds = array<i64: 8, 128>}]} {
    %c0 = arith.constant 0 : index
    %c0_0 = arith.constant 0 : index
    %0 = vector.load %arg1[%c0, %c0_0] : memref<8x128xf32, #tpu.memory_space<vmem>>, vector<8x128xf32>
    %1 = arith.truncf %0 : vector<8x128xf32> to vector<8x128xbf16>
    %c0_1 = arith.constant 0 : index
    %c0_2 = arith.constant 0 : index
    %2 = vector.load %arg2[%c0_1, %c0_2] : memref<128x128xbf16, #tpu.memory_space<vmem>>, vector<128x128xbf16>
    %cst = arith.constant dense<0.000000e+00> : vector<8x128xf32>
    %3 = tpu.matmul %1, %2, %cst {dimension_numbers = #tpu.dot_dimension_numbers<[1], [0], [0], [1], [0, 0, 1, 1], [], []>} : vector<8x128xbf16>, vector<128x128xbf16>, vector<8x128xf32> -> vector<8x128xf32>
    %c0_3 = arith.constant 0 : index
    %c0_4 = arith.constant 0 : index
    %4 = vector.load %arg3[%c0_3, %c0_4] : memref<1x128xf32, #tpu.memory_space<vmem>>, vector<1x128xf32>
    %5 = vector.broadcast %4 : vector<1x128xf32> to vector<8x128xf32>
    %6 = arith.addf %3, %5 : vector<8x128xf32>
    %cst_5 = arith.constant 0.000000e+00 : f32
    %7 = vector.broadcast %cst_5 : f32 to vector<8x128xf32>
    %8 = arith.maximumf %6, %7 : vector<8x128xf32>
    %9 = arith.truncf %8 : vector<8x128xf32> to vector<8x128xbf16>
    %c0_6 = arith.constant 0 : index
    %c0_7 = arith.constant 0 : index
    %10 = vector.load %arg4[%c0_6, %c0_7] : memref<128x128xbf16, #tpu.memory_space<vmem>>, vector<128x128xbf16>
    %cst_8 = arith.constant dense<0.000000e+00> : vector<8x128xf32>
    %11 = tpu.matmul %9, %10, %cst_8 {dimension_numbers = #tpu.dot_dimension_numbers<[1], [0], [0], [1], [0, 0, 1, 1], [], []>} : vector<8x128xbf16>, vector<128x128xbf16>, vector<8x128xf32> -> vector<8x128xf32>
    %c0_9 = arith.constant 0 : index
    %c0_10 = arith.constant 0 : index
    %12 = vector.load %arg5[%c0_9, %c0_10] : memref<1x128xf32, #tpu.memory_space<vmem>>, vector<1x128xf32>
    %13 = vector.broadcast %12 : vector<1x128xf32> to vector<8x128xf32>
    %14 = arith.addf %11, %13 : vector<8x128xf32>
    %cst_11 = arith.constant 0.000000e+00 : f32
    %15 = vector.broadcast %cst_11 : f32 to vector<8x128xf32>
    %16 = arith.maximumf %14, %15 : vector<8x128xf32>
    %17 = arith.truncf %16 : vector<8x128xf32> to vector<8x128xbf16>
    %c0_12 = arith.constant 0 : index
    %c0_13 = arith.constant 0 : index
    %18 = vector.load %arg6[%c0_12, %c0_13] : memref<128x128xbf16, #tpu.memory_space<vmem>>, vector<128x128xbf16>
    %cst_14 = arith.constant dense<0.000000e+00> : vector<8x128xf32>
    %19 = tpu.matmul %17, %18, %cst_14 {dimension_numbers = #tpu.dot_dimension_numbers<[1], [0], [0], [1], [0, 0, 1, 1], [], []>} : vector<8x128xbf16>, vector<128x128xbf16>, vector<8x128xf32> -> vector<8x128xf32>
    %c0_15 = arith.constant 0 : index
    %c0_16 = arith.constant 0 : index
    %20 = vector.load %arg7[%c0_15, %c0_16] : memref<1x128xf32, #tpu.memory_space<vmem>>, vector<1x128xf32>
    %21 = vector.broadcast %20 : vector<1x128xf32> to vector<8x128xf32>
    %22 = arith.addf %19, %21 : vector<8x128xf32>
    %cst_17 = arith.constant 0.000000e+00 : f32
    %23 = vector.broadcast %cst_17 : f32 to vector<8x128xf32>
    %24 = arith.maximumf %22, %23 : vector<8x128xf32>
    %25 = arith.truncf %24 : vector<8x128xf32> to vector<8x128xbf16>
    %c0_18 = arith.constant 0 : index
    %c0_19 = arith.constant 0 : index
    %26 = vector.load %arg8[%c0_18, %c0_19] : memref<128x128xbf16, #tpu.memory_space<vmem>>, vector<128x128xbf16>
    %cst_20 = arith.constant dense<0.000000e+00> : vector<8x128xf32>
    %27 = tpu.matmul %25, %26, %cst_20 {dimension_numbers = #tpu.dot_dimension_numbers<[1], [0], [0], [1], [0, 0, 1, 1], [], []>} : vector<8x128xbf16>, vector<128x128xbf16>, vector<8x128xf32> -> vector<8x128xf32>
    %c0_21 = arith.constant 0 : index
    %c0_22 = arith.constant 0 : index
    %28 = vector.load %arg9[%c0_21, %c0_22] : memref<1x128xf32, #tpu.memory_space<vmem>>, vector<1x128xf32>
    %29 = vector.broadcast %28 : vector<1x128xf32> to vector<8x128xf32>
    %30 = arith.addf %27, %29 : vector<8x128xf32>
    %cst_23 = arith.constant 0.000000e+00 : f32
    %31 = vector.broadcast %cst_23 : f32 to vector<8x128xf32>
    %32 = arith.maximumf %30, %31 : vector<8x128xf32>
    %33 = arith.truncf %32 : vector<8x128xf32> to vector<8x128xbf16>
    %c0_24 = arith.constant 0 : index
    %c0_25 = arith.constant 0 : index
    %34 = vector.load %arg10[%c0_24, %c0_25] : memref<128x128xbf16, #tpu.memory_space<vmem>>, vector<128x128xbf16>
    %cst_26 = arith.constant dense<0.000000e+00> : vector<8x128xf32>
    %35 = tpu.matmul %33, %34, %cst_26 {dimension_numbers = #tpu.dot_dimension_numbers<[1], [0], [0], [1], [0, 0, 1, 1], [], []>} : vector<8x128xbf16>, vector<128x128xbf16>, vector<8x128xf32> -> vector<8x128xf32>
    %c0_27 = arith.constant 0 : index
    %c0_28 = arith.constant 0 : index
    %36 = vector.load %arg11[%c0_27, %c0_28] : memref<1x128xf32, #tpu.memory_space<vmem>>, vector<1x128xf32>
    %37 = vector.broadcast %36 : vector<1x128xf32> to vector<8x128xf32>
    %38 = arith.addf %35, %37 : vector<8x128xf32>
    %cst_29 = arith.constant 0.000000e+00 : f32
    %39 = vector.broadcast %cst_29 : f32 to vector<8x128xf32>
    %40 = arith.maximumf %38, %39 : vector<8x128xf32>
    %41 = arith.truncf %40 : vector<8x128xf32> to vector<8x128xbf16>
    %c0_30 = arith.constant 0 : index
    %c0_31 = arith.constant 0 : index
    %42 = vector.load %arg12[%c0_30, %c0_31] : memref<128x128xbf16, #tpu.memory_space<vmem>>, vector<128x128xbf16>
    %cst_32 = arith.constant dense<0.000000e+00> : vector<8x128xf32>
    %43 = tpu.matmul %41, %42, %cst_32 {dimension_numbers = #tpu.dot_dimension_numbers<[1], [0], [0], [1], [0, 0, 1, 1], [], []>} : vector<8x128xbf16>, vector<128x128xbf16>, vector<8x128xf32> -> vector<8x128xf32>
    %c0_33 = arith.constant 0 : index
    %c0_34 = arith.constant 0 : index
    %44 = vector.load %arg13[%c0_33, %c0_34] : memref<1x128xf32, #tpu.memory_space<vmem>>, vector<1x128xf32>
    %45 = vector.broadcast %44 : vector<1x128xf32> to vector<8x128xf32>
    %46 = arith.addf %43, %45 : vector<8x128xf32>
    %cst_35 = arith.constant 0.000000e+00 : f32
    %47 = vector.broadcast %cst_35 : f32 to vector<8x128xf32>
    %48 = arith.maximumf %46, %47 : vector<8x128xf32>
    %c0_36 = arith.constant 0 : index
    %c0_37 = arith.constant 0 : index
    %49 = vector.load %arg14[%c0_36, %c0_37] : memref<8x128xf32, #tpu.memory_space<vmem>>, vector<8x128xf32>
    tpu.vector_store %arg14[%c0_36, %c0_37], %48 {strides = array<i32>} : memref<8x128xf32, #tpu.memory_space<vmem>>, vector<8x128xf32>,
    return
  }
  func.func @transform_0(%arg0: i32) -> (i32, i32) {
    %c0_i32 = arith.constant 0 : i32
    %c0_i32_0 = arith.constant 0 : i32
    return %arg0, %c0_i32 : i32, i32
  }
  func.func @transform_1(%arg0: i32) -> (i32, i32) {
    %c0_i32 = arith.constant 0 : i32
    %c0_i32_0 = arith.constant 0 : i32
    %c0_i32_1 = arith.constant 0 : i32
    return %c0_i32, %c0_i32_0 : i32, i32
  }
  func.func @transform_2(%arg0: i32) -> (i32, i32) {
    %c0_i32 = arith.constant 0 : i32
    %c0_i32_0 = arith.constant 0 : i32
    %c0_i32_1 = arith.constant 0 : i32
    return %c0_i32, %c0_i32_0 : i32, i32
  }
  func.func @transform_3(%arg0: i32) -> (i32, i32) {
    %c0_i32 = arith.constant 0 : i32
    %c0_i32_0 = arith.constant 0 : i32
    %c0_i32_1 = arith.constant 0 : i32
    return %c0_i32, %c0_i32_0 : i32, i32
  }
  func.func @transform_4(%arg0: i32) -> (i32, i32) {
    %c0_i32 = arith.constant 0 : i32
    %c0_i32_0 = arith.constant 0 : i32
    %c0_i32_1 = arith.constant 0 : i32
    return %c0_i32, %c0_i32_0 : i32, i32
  }
  func.func @transform_5(%arg0: i32) -> (i32, i32) {
    %c0_i32 = arith.constant 0 : i32
    %c0_i32_0 = arith.constant 0 : i32
    %c0_i32_1 = arith.constant 0 : i32
    return %c0_i32, %c0_i32_0 : i32, i32
  }
  func.func @transform_6(%arg0: i32) -> (i32, i32) {
    %c0_i32 = arith.constant 0 : i32
    %c0_i32_0 = arith.constant 0 : i32
    %c0_i32_1 = arith.constant 0 : i32
    return %c0_i32, %c0_i32_0 : i32, i32
  }
  func.func @transform_7(%arg0: i32) -> (i32, i32) {
    %c0_i32 = arith.constant 0 : i32
    %c0_i32_0 = arith.constant 0 : i32
    %c0_i32_1 = arith.constant 0 : i32
    return %c0_i32, %c0_i32_0 : i32, i32
  }
  func.func @transform_8(%arg0: i32) -> (i32, i32) {
    %c0_i32 = arith.constant 0 : i32
    %c0_i32_0 = arith.constant 0 : i32
    %c0_i32_1 = arith.constant 0 : i32
    return %c0_i32, %c0_i32_0 : i32, i32
  }
  func.func @transform_9(%arg0: i32) -> (i32, i32) {
    %c0_i32 = arith.constant 0 : i32
    %c0_i32_0 = arith.constant 0 : i32
    %c0_i32_1 = arith.constant 0 : i32
    return %c0_i32, %c0_i32_0 : i32, i32
  }
  func.func @transform_10(%arg0: i32) -> (i32, i32) {
    %c0_i32 = arith.constant 0 : i32
    %c0_i32_0 = arith.constant 0 : i32
    %c0_i32_1 = arith.constant 0 : i32
    return %c0_i32, %c0_i32_0 : i32, i32
  }
  func.func @transform_11(%arg0: i32) -> (i32, i32) {
    %c0_i32 = arith.constant 0 : i32
    %c0_i32_0 = arith.constant 0 : i32
    %c0_i32_1 = arith.constant 0 : i32
    return %c0_i32, %c0_i32_0 : i32, i32
  }
  func.func @transform_12(%arg0: i32) -> (i32, i32) {
    %c0_i32 = arith.constant 0 : i32
    %c0_i32_0 = arith.constant 0 : i32
    %c0_i32_1 = arith.constant 0 : i32
    return %c0_i32, %c0_i32_0 : i32, i32
  }
  func.func @transform_13(%arg0: i32) -> (i32, i32) {
    %c0_i32 = arith.constant 0 : i32
    %c0_i32_0 = arith.constant 0 : i32
    return %arg0, %c0_i32 : i32, i32
  }
}

module attributes {stable_mosaic.version = 11 : i64} {
  func.func @kernel(%arg0: i32, %arg1: memref<8x128xf32, #tpu.memory_space<vmem>>, %arg2: memref<128x128xbf16, #tpu.memory_space<vmem>>, %arg3: memref<1x128xf32, #tpu.memory_space<vmem>>, %arg4: memref<128x128xbf16, #tpu.memory_space<vmem>>, %arg5: memref<1x128xf32, #tpu.memory_space<vmem>>, %arg6: memref<128x128xbf16, #tpu.memory_space<vmem>>, %arg7: memref<1x128xf32, #tpu.memory_space<vmem>>, %arg8: memref<128x128xbf16, #tpu.memory_space<vmem>>, %arg9: memref<1x128xf32, #tpu.memory_space<vmem>>, %arg10: memref<128x128xbf16, #tpu.memory_space<vmem>>, %arg11: memref<1x128xf32, #tpu.memory_space<vmem>>, %arg12: memref<128x128xbf16, #tpu.memory_space<vmem>>, %arg13: memref<1x128xf32, #tpu.memory_space<vmem>>, %arg14: memref<8x128xf32, #tpu.memory_space<vmem>>) attributes {dimension_semantics = [#tpu.dimension_semantics<parallel>], iteration_bounds = array<i64: 1>, scalar_prefetch = 0 : i64, scratch_operands = 0 : i64, tpu.core_type = #tpu.core_type<tc>, window_params = [{transform_indices = @transform_0, window_bounds = array<i64: 8, 128>}, {pipeline_mode = #tpu.pipeline_mode<synchronous>, transform_indices = @transform_1, window_bounds = array<i64: 128, 128>}, {pipeline_mode = #tpu.pipeline_mode<synchronous>, transform_indices = @transform_2, window_bounds = array<i64: 1, 128>}, {pipeline_mode = #tpu.pipeline_mode<synchronous>, transform_indices = @transform_3, window_bounds = array<i64: 128, 128>}, {pipeline_mode = #tpu.pipeline_mode<synchronous>, transform_indices = @transform_4, window_bounds = array<i64: 1, 128>}, {pipeline_mode = #tpu.pipeline_mode<synchronous>, transform_indices = @transform_5, window_bounds = array<i64: 128, 128>}, {pipeline_mode = #tpu.pipeline_mode<synchronous>, transform_indices = @transform_6, window_bounds = array<i64: 1, 128>}, {pipeline_mode = #tpu.pipeline_mode<synchronous>, transform_indices = @transform_7, window_bounds = array<i64: 128, 128>}, {pipeline_mode = #tpu.pipeline_mode<synchronous>, transform_indices = @transform_8, window_bounds = array<i64: 1, 128>}, {pipeline_mode = #tpu.pipeline_mode<synchronous>, transform_indices = @transform_9, window_bounds = array<i64: 128, 128>}, {pipeline_mode = #tpu.pipeline_mode<synchronous>, transform_indices = @transform_10, window_bounds = array<i64: 1, 128>}, {pipeline_mode = #tpu.pipeline_mode<synchronous>, transform_indices = @transform_11, window_bounds = array<i64: 128, 128>}, {pipeline_mode = #tpu.pipeline_mode<synchronous>, transform_indices = @transform_12, window_bounds = array<i64: 1, 128>}, {transform_indices = @transform_13, window_bounds = array<i64: 8, 128>}]} {
    %c0 = arith.constant 0 : index
    %c0_0 = arith.constant 0 : index
    %0 = vector.load %arg1[%c0, %c0_0] : memref<8x128xf32, #tpu.memory_space<vmem>>, vector<8x128xf32>
    %1 = arith.truncf %0 : vector<8x128xf32> to vector<8x128xbf16>
    %c0_1 = arith.constant 0 : index
    %c0_2 = arith.constant 0 : index
    %2 = vector.load %arg2[%c0_1, %c0_2] : memref<128x128xbf16, #tpu.memory_space<vmem>>, vector<128x128xbf16>
    %cst = arith.constant dense<0.000000e+00> : vector<8x128xf32>
    %3 = tpu.matmul %1, %2, %cst {dimension_numbers = #tpu.dot_dimension_numbers<[1], [0], [0], [1], [0, 0, 1, 1], [], []>} : vector<8x128xbf16>, vector<128x128xbf16>, vector<8x128xf32> -> vector<8x128xf32>
    %c0_3 = arith.constant 0 : index
    %c0_4 = arith.constant 0 : index
    %4 = vector.load %arg3[%c0_3, %c0_4] : memref<1x128xf32, #tpu.memory_space<vmem>>, vector<1x128xf32>
    %5 = vector.broadcast %4 : vector<1x128xf32> to vector<8x128xf32>
    %6 = arith.addf %3, %5 : vector<8x128xf32>
    %cst_5 = arith.constant 0.000000e+00 : f32
    %7 = vector.broadcast %cst_5 : f32 to vector<8x128xf32>
    %8 = arith.maximumf %6, %7 : vector<8x128xf32>
    %9 = arith.truncf %8 : vector<8x128xf32> to vector<8x128xbf16>
    %c0_6 = arith.constant 0 : index
    %c0_7 = arith.constant 0 : index
    %10 = vector.load %arg4[%c0_6, %c0_7] : memref<128x128xbf16, #tpu.memory_space<vmem>>, vector<128x128xbf16>
    %cst_8 = arith.constant dense<0.000000e+00> : vector<8x128xf32>
    %11 = tpu.matmul %9, %10, %cst_8 {dimension_numbers = #tpu.dot_dimension_numbers<[1], [0], [0], [1], [0, 0, 1, 1], [], []>} : vector<8x128xbf16>, vector<128x128xbf16>, vector<8x128xf32> -> vector<8x128xf32>
    %c0_9 = arith.constant 0 : index
    %c0_10 = arith.constant 0 : index
    %12 = vector.load %arg5[%c0_9, %c0_10] : memref<1x128xf32, #tpu.memory_space<vmem>>, vector<1x128xf32>
    %13 = vector.broadcast %12 : vector<1x128xf32> to vector<8x128xf32>
    %14 = arith.addf %11, %13 : vector<8x128xf32>
    %cst_11 = arith.constant 0.000000e+00 : f32
    %15 = vector.broadcast %cst_11 : f32 to vector<8x128xf32>
    %16 = arith.maximumf %14, %15 : vector<8x128xf32>
    %17 = arith.truncf %16 : vector<8x128xf32> to vector<8x128xbf16>
    %c0_12 = arith.constant 0 : index
    %c0_13 = arith.constant 0 : index
    %18 = vector.load %arg6[%c0_12, %c0_13] : memref<128x128xbf16, #tpu.memory_space<vmem>>, vector<128x128xbf16>
    %cst_14 = arith.constant dense<0.000000e+00> : vector<8x128xf32>
    %19 = tpu.matmul %17, %18, %cst_14 {dimension_numbers = #tpu.dot_dimension_numbers<[1], [0], [0], [1], [0, 0, 1, 1], [], []>} : vector<8x128xbf16>, vector<128x128xbf16>, vector<8x128xf32> -> vector<8x128xf32>
    %c0_15 = arith.constant 0 : index
    %c0_16 = arith.constant 0 : index
    %20 = vector.load %arg7[%c0_15, %c0_16] : memref<1x128xf32, #tpu.memory_space<vmem>>, vector<1x128xf32>
    %21 = vector.broadcast %20 : vector<1x128xf32> to vector<8x128xf32>
    %22 = arith.addf %19, %21 : vector<8x128xf32>
    %cst_17 = arith.constant 0.000000e+00 : f32
    %23 = vector.broadcast %cst_17 : f32 to vector<8x128xf32>
    %24 = arith.maximumf %22, %23 : vector<8x128xf32>
    %25 = arith.truncf %24 : vector<8x128xf32> to vector<8x128xbf16>
    %c0_18 = arith.constant 0 : index
    %c0_19 = arith.constant 0 : index
    %26 = vector.load %arg8[%c0_18, %c0_19] : memref<128x128xbf16, #tpu.memory_space<vmem>>, vector<128x128xbf16>
    %cst_20 = arith.constant dense<0.000000e+00> : vector<8x128xf32>
    %27 = tpu.matmul %25, %26, %cst_20 {dimension_numbers = #tpu.dot_dimension_numbers<[1], [0], [0], [1], [0, 0, 1, 1], [], []>} : vector<8x128xbf16>, vector<128x128xbf16>, vector<8x128xf32> -> vector<8x128xf32>
    %c0_21 = arith.constant 0 : index
    %c0_22 = arith.constant 0 : index
    %28 = vector.load %arg9[%c0_21, %c0_22] : memref<1x128xf32, #tpu.memory_space<vmem>>, vector<1x128xf32>
    %29 = vector.broadcast %28 : vector<1x128xf32> to vector<8x128xf32>
    %30 = arith.addf %27, %29 : vector<8x128xf32>
    %cst_23 = arith.constant 0.000000e+00 : f32
    %31 = vector.broadcast %cst_23 : f32 to vector<8x128xf32>
    %32 = arith.maximumf %30, %31 : vector<8x128xf32>
    %33 = arith.truncf %32 : vector<8x128xf32> to vector<8x128xbf16>
    %c0_24 = arith.constant 0 : index
    %c0_25 = arith.constant 0 : index
    %34 = vector.load %arg10[%c0_24, %c0_25] : memref<128x128xbf16, #tpu.memory_space<vmem>>, vector<128x128xbf16>
    %cst_26 = arith.constant dense<0.000000e+00> : vector<8x128xf32>
    %35 = tpu.matmul %33, %34, %cst_26 {dimension_numbers = #tpu.dot_dimension_numbers<[1], [0], [0], [1], [0, 0, 1, 1], [], []>} : vector<8x128xbf16>, vector<128x128xbf16>, vector<8x128xf32> -> vector<8x128xf32>
    %c0_27 = arith.constant 0 : index
    %c0_28 = arith.constant 0 : index
    %36 = vector.load %arg11[%c0_27, %c0_28] : memref<1x128xf32, #tpu.memory_space<vmem>>, vector<1x128xf32>
    %37 = vector.broadcast %36 : vector<1x128xf32> to vector<8x128xf32>
    %38 = arith.addf %35, %37 : vector<8x128xf32>
    %cst_29 = arith.constant 0.000000e+00 : f32
    %39 = vector.broadcast %cst_29 : f32 to vector<8x128xf32>
    %40 = arith.maximumf %38, %39 : vector<8x128xf32>
    %41 = arith.truncf %40 : vector<8x128xf32> to vector<8x128xbf16>
    %c0_30 = arith.constant 0 : index
    %c0_31 = arith.constant 0 : index
    %42 = vector.load %arg12[%c0_30, %c0_31] : memref<128x128xbf16, #tpu.memory_space<vmem>>, vector<128x128xbf16>
    %cst_32 = arith.constant dense<0.000000e+00> : vector<8x128xf32>
    %43 = tpu.matmul %41, %42, %cst_32 {dimension_numbers = #tpu.dot_dimension_numbers<[1], [0], [0], [1], [0, 0, 1, 1], [], []>} : vector<8x128xbf16>, vector<128x128xbf16>, vector<8x128xf32> -> vector<8x128xf32>
    %c0_33 = arith.constant 0 : index
    %c0_34 = arith.constant 0 : index
    %44 = vector.load %arg13[%c0_33, %c0_34] : memref<1x128xf32, #tpu.memory_space<vmem>>, vector<1x128xf32>
    %45 = vector.broadcast %44 : vector<1x128xf32> to vector<8x128xf32>
    %46 = arith.addf %43, %45 : vector<8x128xf32>
    %cst_35 = arith.constant 0.000000e+00 : f32
    %47 = vector.broadcast %cst_35 : f32 to vector<8x128xf32>
    %48 = arith.maximumf %46, %47 : vector<8x128xf32>
    %c0_36 = arith.constant 0 : index
    %c0_37 = arith.constant 0 : index
    %49 = vector.load %arg14[%c0_36, %c0_37] : memref<8x128xf32, #tpu.memory_space<vmem>>, vector<8x128xf32>
    tpu.vector_store %arg14[%c0_36, %c0_37], %48 {strides = array<i32>} : memref<8x128xf32, #tpu.memory_space<vmem>>, vector<8x128xf32>,
    return
  }
  func.func @transform_0(%arg0: i32) -> (i32, i32) {
    %c0_i32 = arith.constant 0 : i32
    %c0_i32_0 = arith.constant 0 : i32
    return %arg0, %c0_i32 : i32, i32
  }
  func.func @transform_1(%arg0: i32) -> (i32, i32) {
    %c0_i32 = arith.constant 0 : i32
    %c0_i32_0 = arith.constant 0 : i32
    %c0_i32_1 = arith.constant 0 : i32
    return %c0_i32, %c0_i32_0 : i32, i32
  }
  func.func @transform_2(%arg0: i32) -> (i32, i32) {
    %c0_i32 = arith.constant 0 : i32
    %c0_i32_0 = arith.constant 0 : i32
    %c0_i32_1 = arith.constant 0 : i32
    return %c0_i32, %c0_i32_0 : i32, i32
  }
  func.func @transform_3(%arg0: i32) -> (i32, i32) {
    %c0_i32 = arith.constant 0 : i32
    %c0_i32_0 = arith.constant 0 : i32
    %c0_i32_1 = arith.constant 0 : i32
    return %c0_i32, %c0_i32_0 : i32, i32
  }
  func.func @transform_4(%arg0: i32) -> (i32, i32) {
    %c0_i32 = arith.constant 0 : i32
    %c0_i32_0 = arith.constant 0 : i32
    %c0_i32_1 = arith.constant 0 : i32
    return %c0_i32, %c0_i32_0 : i32, i32
  }
  func.func @transform_5(%arg0: i32) -> (i32, i32) {
    %c0_i32 = arith.constant 0 : i32
    %c0_i32_0 = arith.constant 0 : i32
    %c0_i32_1 = arith.constant 0 : i32
    return %c0_i32, %c0_i32_0 : i32, i32
  }
  func.func @transform_6(%arg0: i32) -> (i32, i32) {
    %c0_i32 = arith.constant 0 : i32
    %c0_i32_0 = arith.constant 0 : i32
    %c0_i32_1 = arith.constant 0 : i32
    return %c0_i32, %c0_i32_0 : i32, i32
  }
  func.func @transform_7(%arg0: i32) -> (i32, i32) {
    %c0_i32 = arith.constant 0 : i32
    %c0_i32_0 = arith.constant 0 : i32
    %c0_i32_1 = arith.constant 0 : i32
    return %c0_i32, %c0_i32_0 : i32, i32
  }
  func.func @transform_8(%arg0: i32) -> (i32, i32) {
    %c0_i32 = arith.constant 0 : i32
    %c0_i32_0 = arith.constant 0 : i32
    %c0_i32_1 = arith.constant 0 : i32
    return %c0_i32, %c0_i32_0 : i32, i32
  }
  func.func @transform_9(%arg0: i32) -> (i32, i32) {
    %c0_i32 = arith.constant 0 : i32
    %c0_i32_0 = arith.constant 0 : i32
    %c0_i32_1 = arith.constant 0 : i32
    return %c0_i32, %c0_i32_0 : i32, i32
  }
  func.func @transform_10(%arg0: i32) -> (i32, i32) {
    %c0_i32 = arith.constant 0 : i32
    %c0_i32_0 = arith.constant 0 : i32
    %c0_i32_1 = arith.constant 0 : i32
    return %c0_i32, %c0_i32_0 : i32, i32
  }
  func.func @transform_11(%arg0: i32) -> (i32, i32) {
    %c0_i32 = arith.constant 0 : i32
    %c0_i32_0 = arith.constant 0 : i32
    %c0_i32_1 = arith.constant 0 : i32
    return %c0_i32, %c0_i32_0 : i32, i32
  }
  func.func @transform_12(%arg0: i32) -> (i32, i32) {
    %c0_i32 = arith.constant 0 : i32
    %c0_i32_0 = arith.constant 0 : i32
    %c0_i32_1 = arith.constant 0 : i32
    return %c0_i32, %c0_i32_0 : i32, i32
  }
  func.func @transform_13(%arg0: i32) -> (i32, i32) {
    %c0_i32 = arith.constant 0 : i32
    %c0_i32_0 = arith.constant 0 : i32
    return %arg0, %c0_i32 : i32, i32
  }
}

</mosaic_0001>

<llo_original>
// kernel: autoencoder_forward.1
$region0: #{autoencoder_forward.1}
  #allocation0 [shape = 'u32[]', space=smem, size = 0x4, offset = 0x4, fixed_abs, tag = 'smem constant byte address 0x4 - core index']
  #allocation1 [shape = 'u32[72,128]{1,0:T(1,128)}', space=vmem, size = 0x9000, scoped, tag = 'internal scratch']
  %s0 = inlined_call_operand.vmem [shape: f32[8,128], index: 0, kind: input, shape index: {}]
  %s1 = inlined_call_operand.hbm [shape: bf16[128,128], index: 1, kind: input, shape index: {}]
  %s2 = inlined_call_operand.vmem [shape: f32[1,128], index: 2, kind: input, shape index: {}]
  %s3 = inlined_call_operand.hbm [shape: bf16[128,128], index: 3, kind: input, shape index: {}]
  %s4 = inlined_call_operand.vmem [shape: f32[1,128], index: 4, kind: input, shape index: {}]
  %s5 = inlined_call_operand.hbm [shape: bf16[128,128], index: 5, kind: input, shape index: {}]
  %s6 = inlined_call_operand.vmem [shape: f32[1,128], index: 6, kind: input, shape index: {}]
  %s7 = inlined_call_operand.hbm [shape: bf16[128,128], index: 7, kind: input, shape index: {}]
  %s8 = inlined_call_operand.vmem [shape: f32[1,128], index: 8, kind: input, shape index: {}]
  %s9 = inlined_call_operand.hbm [shape: bf16[128,128], index: 9, kind: input, shape index: {}]
  %s10 = inlined_call_operand.vmem [shape: f32[1,128], index: 10, kind: input, shape index: {}]
  %s11 = inlined_call_operand.hbm [shape: bf16[128,128], index: 11, kind: input, shape index: {}]
  %s12 = inlined_call_operand.vmem [shape: f32[1,128], index: 12, kind: input, shape index: {}]
  %s13 = inlined_call_operand.hbm [shape: f32[8,128], index: 13, kind: output, shape index: {}]
  %s14 = sld [smem:[#allocation0]]
  $region86: #{autoencoder_forward.1} parent=0
    _
  %s16 = ssub.s32 1, %s14
  %s17 = scalar_select 0, %s16, %s14
  $region1: #{autoencoder_forward.1} parent=0
    #allocation2 [shape = 'u8[32768]{0}', space=vmem, size = 0x8000, scoped, tag = 'input window, operand 1, single buffered']
    #allocation3 [shape = 's32[1]{0}', space=sflag, size = 0x4, scoped, tag = 'scoped memory for autoencoder_forward.1']
    #allocation4 [shape = 's32[1]{0}', space=sflag, size = 0x4, scoped, tag = 'scoped memory for autoencoder_forward.1']
    #allocation5 [shape = 'u8[32768]{0}', space=vmem, size = 0x8000, scoped, tag = 'input window, operand 3, single buffered']
    #allocation6 [shape = 's32[1]{0}', space=sflag, size = 0x4, scoped, tag = 'scoped memory for autoencoder_forward.1']
    #allocation7 [shape = 'u8[32768]{0}', space=vmem, size = 0x8000, scoped, tag = 'input window, operand 5, single buffered']
    #allocation8 [shape = 'u8[32768]{0}', space=vmem, size = 0x8000, scoped, tag = 'input window, operand 7, single buffered']
    #allocation9 [shape = 's32[1]{0}', space=sflag, size = 0x4, scoped, tag = 'scoped memory for autoencoder_forward.1']
    #allocation10 [shape = 'u8[32768]{0}', space=vmem, size = 0x8000, scoped, tag = 'input window, operand 9, single buffered']
    #allocation11 [shape = 'u8[32768]{0}', space=vmem, size = 0x8000, scoped, tag = 'input window, operand 11, single buffered']
    #allocation12 [shape = 's32[1]{0}', space=sflag, size = 0x4, scoped, tag = 'scoped memory for autoencoder_forward.1']
    #allocation13 [shape = 'u8[4096]{0}', space=vmem, size = 0x1000, scoped, tag = 'output window, operand 0, single buffered']
    %18 = vsyncpa [#allocation3], 0
    %19 = vsyncpa [#allocation6], 0
    %20 = vsyncpa [#allocation9], 0
    %21 = vsyncpa [#allocation12], 0
    %22 = vsyncpa [#allocation4], 0
    // Predicated region
    $region2: #{autoencoder_forward.1} parent=1 // pred_check
      _
    $region3: #{autoencoder_forward.1} parent=1 // pred_check_branch
      %24 = sbr.rel (0) target = $region5
    $region4: #{autoencoder_forward.1} parent=1 // pred_region
      _
    $region5: #{autoencoder_forward.1} parent=1 // pred_fallthru
      _
    // Predicated region
    $region6: #{autoencoder_forward.1} parent=1 // pred_check
      _
    $region7: #{autoencoder_forward.1} parent=1 // pred_check_branch
      %26 = sbr.rel (0) target = $region9
    $region8: #{autoencoder_forward.1} parent=1 // pred_region
      %28 = vsyncadd [#allocation3], 0
      %s29 = sshll.u32 %s1, 4
      %s30 = int_to_ptr.hbm [resolvable:$true] %s29
      %s31 = sshll.u32 [#allocation2], 4
      %s32 = int_to_ptr.vmem [resolvable:$true] %s31
      %37 = dma.hbm_to_vmem [thread:$0]  %s30, 1024, %s32, [#allocation3], 64, 64, 4
    $region9: #{autoencoder_forward.1} parent=1 // pred_fallthru
      _
    // Predicated region
    $region10: #{autoencoder_forward.1} parent=1 // pred_check
      _
    $region11: #{autoencoder_forward.1} parent=1 // pred_check_branch
      %39 = sbr.rel (0) target = $region13
    $region12: #{autoencoder_forward.1} parent=1 // pred_region
      _
    $region13: #{autoencoder_forward.1} parent=1 // pred_fallthru
      _
    // Predicated region
    $region14: #{autoencoder_forward.1} parent=1 // pred_check
      _
    $region15: #{autoencoder_forward.1} parent=1 // pred_check_branch
      %41 = sbr.rel (0) target = $region17
    $region16: #{autoencoder_forward.1} parent=1 // pred_region
      %43 = vsyncadd [#allocation6], 0
      %s44 = sshll.u32 %s3, 4
      %s45 = int_to_ptr.hbm [resolvable:$true] %s44
      %s46 = sshll.u32 [#allocation5], 4
      %s47 = int_to_ptr.vmem [resolvable:$true] %s46
      %52 = dma.hbm_to_vmem [thread:$0]  %s45, 1024, %s47, [#allocation6], 64, 64, 4
    $region17: #{autoencoder_forward.1} parent=1 // pred_fallthru
      _
    // Predicated region
    $region18: #{autoencoder_forward.1} parent=1 // pred_check
      _
    $region19: #{autoencoder_forward.1} parent=1 // pred_check_branch
      %54 = sbr.rel (0) target = $region21
    $region20: #{autoencoder_forward.1} parent=1 // pred_region
      _
    $region21: #{autoencoder_forward.1} parent=1 // pred_fallthru
      _
    // Predicated region
    $region22: #{autoencoder_forward.1} parent=1 // pred_check
      _
    $region23: #{autoencoder_forward.1} parent=1 // pred_check_branch
      %56 = sbr.rel (0) target = $region25
    $region24: #{autoencoder_forward.1} parent=1 // pred_region
      %58 = vsyncadd [#allocation6], 0
      %s59 = sshll.u32 %s5, 4
      %s60 = int_to_ptr.hbm [resolvable:$true] %s59
      %s61 = sshll.u32 [#allocation7], 4
      %s62 = int_to_ptr.vmem [resolvable:$true] %s61
      %67 = dma.hbm_to_vmem [thread:$0]  %s60, 1024, %s62, [#allocation6], 64, 64, 4
    $region25: #{autoencoder_forward.1} parent=1 // pred_fallthru
      _
    // Predicated region
    $region26: #{autoencoder_forward.1} parent=1 // pred_check
      _
    $region27: #{autoencoder_forward.1} parent=1 // pred_check_branch
      %69 = sbr.rel (0) target = $region29
    $region28: #{autoencoder_forward.1} parent=1 // pred_region
      _
    $region29: #{autoencoder_forward.1} parent=1 // pred_fallthru
      _
    // Predicated region
    $region30: #{autoencoder_forward.1} parent=1 // pred_check
      _
    $region31: #{autoencoder_forward.1} parent=1 // pred_check_branch
      %71 = sbr.rel (0) target = $region33
    $region32: #{autoencoder_forward.1} parent=1 // pred_region
      %73 = vsyncadd [#allocation9], 0
      %s74 = sshll.u32 %s7, 4
      %s75 = int_to_ptr.hbm [resolvable:$true] %s74
      %s76 = sshll.u32 [#allocation8], 4
      %s77 = int_to_ptr.vmem [resolvable:$true] %s76
      %82 = dma.hbm_to_vmem [thread:$0]  %s75, 1024, %s77, [#allocation9], 64, 64, 4
    $region33: #{autoencoder_forward.1} parent=1 // pred_fallthru
      _
    // Predicated region
    $region34: #{autoencoder_forward.1} parent=1 // pred_check
      _
    $region35: #{autoencoder_forward.1} parent=1 // pred_check_branch
      %84 = sbr.rel (0) target = $region37
    $region36: #{autoencoder_forward.1} parent=1 // pred_region
      _
    $region37: #{autoencoder_forward.1} parent=1 // pred_fallthru
      _
    // Predicated region
    $region38: #{autoencoder_forward.1} parent=1 // pred_check
      _
    $region39: #{autoencoder_forward.1} parent=1 // pred_check_branch
      %86 = sbr.rel (0) target = $region41
    $region40: #{autoencoder_forward.1} parent=1 // pred_region
      %88 = vsyncadd [#allocation9], 0
      %s89 = sshll.u32 %s9, 4
      %s90 = int_to_ptr.hbm [resolvable:$true] %s89
      %s91 = sshll.u32 [#allocation10], 4
      %s92 = int_to_ptr.vmem [resolvable:$true] %s91
      %97 = dma.hbm_to_vmem [thread:$0]  %s90, 1024, %s92, [#allocation9], 64, 64, 4
    $region41: #{autoencoder_forward.1} parent=1 // pred_fallthru
      _
    // Predicated region
    $region42: #{autoencoder_forward.1} parent=1 // pred_check
      _
    $region43: #{autoencoder_forward.1} parent=1 // pred_check_branch
      %99 = sbr.rel (0) target = $region45
    $region44: #{autoencoder_forward.1} parent=1 // pred_region
      _
    $region45: #{autoencoder_forward.1} parent=1 // pred_fallthru
      _
    // Predicated region
    $region46: #{autoencoder_forward.1} parent=1 // pred_check
      _
    $region47: #{autoencoder_forward.1} parent=1 // pred_check_branch
      %101 = sbr.rel (0) target = $region49
    $region48: #{autoencoder_forward.1} parent=1 // pred_region
      %103 = vsyncadd [#allocation12], 0
      %s104 = sshll.u32 %s11, 4
      %s105 = int_to_ptr.hbm [resolvable:$true] %s104
      %s106 = sshll.u32 [#allocation11], 4
      %s107 = int_to_ptr.vmem [resolvable:$true] %s106
      %112 = dma.hbm_to_vmem [thread:$0]  %s105, 1024, %s107, [#allocation12], 64, 64, 4
    $region49: #{autoencoder_forward.1} parent=1 // pred_fallthru
      _
    // Predicated region
    $region50: #{autoencoder_forward.1} parent=1 // pred_check
      _
    $region51: #{autoencoder_forward.1} parent=1 // pred_check_branch
      %114 = sbr.rel (0) target = $region53
    $region52: #{autoencoder_forward.1} parent=1 // pred_region
      _
    $region53: #{autoencoder_forward.1} parent=1 // pred_fallthru
      _
    // Predicated region
    $region54: #{autoencoder_forward.1} parent=1 // pred_check
      _
    $region55: #{autoencoder_forward.1} parent=1 // pred_check_branch
      %116 = sbr.rel (0) target = $region57
    $region56: #{autoencoder_forward.1} parent=1 // pred_region
      %118 = dma.done [#allocation3], 1024
    $region57: #{autoencoder_forward.1} parent=1 // pred_fallthru
      _
    // Predicated region
    $region58: #{autoencoder_forward.1} parent=1 // pred_check
      _
    $region59: #{autoencoder_forward.1} parent=1 // pred_check_branch
      %120 = sbr.rel (0) target = $region61
    $region60: #{autoencoder_forward.1} parent=1 // pred_region
      %122 = dma.done [#allocation6], 1024
    $region61: #{autoencoder_forward.1} parent=1 // pred_fallthru
      _
    // Predicated region
    $region62: #{autoencoder_forward.1} parent=1 // pred_check
      _
    $region63: #{autoencoder_forward.1} parent=1 // pred_check_branch
      %124 = sbr.rel (0) target = $region65
    $region64: #{autoencoder_forward.1} parent=1 // pred_region
      %126 = dma.done [#allocation6], 1024
    $region65: #{autoencoder_forward.1} parent=1 // pred_fallthru
      _
    // Predicated region
    $region66: #{autoencoder_forward.1} parent=1 // pred_check
      _
    $region67: #{autoencoder_forward.1} parent=1 // pred_check_branch
      %128 = sbr.rel (0) target = $region69
    $region68: #{autoencoder_forward.1} parent=1 // pred_region
      %130 = dma.done [#allocation9], 1024
    $region69: #{autoencoder_forward.1} parent=1 // pred_fallthru
      _
    // Predicated region
    $region70: #{autoencoder_forward.1} parent=1 // pred_check
      _
    $region71: #{autoencoder_forward.1} parent=1 // pred_check_branch
      %132 = sbr.rel (0) target = $region73
    $region72: #{autoencoder_forward.1} parent=1 // pred_region
      %134 = dma.done [#allocation9], 1024
    $region73: #{autoencoder_forward.1} parent=1 // pred_fallthru
      _
    // Predicated region
    $region74: #{autoencoder_forward.1} parent=1 // pred_check
      _
    $region75: #{autoencoder_forward.1} parent=1 // pred_check_branch
      %136 = sbr.rel (0) target = $region77
    $region76: #{autoencoder_forward.1} parent=1 // pred_region
      %138 = dma.done [#allocation12], 1024
    $region77: #{autoencoder_forward.1} parent=1 // pred_fallthru
      _
    %v139 = vld [vmem:[%s0] sm:$0xff]
    %v140 = vpack.c.bf16 %v139, %v139
    %v141 = vld [vmem:[#allocation2] sm:$0xf]
    %v142 = vld [vmem:[#allocation2 + $0x4] sm:$0xf]
    %v143 = vld [vmem:[#allocation2 + $0x8] sm:$0xf]
    %v144 = vld [vmem:[#allocation2 + $0xc] sm:$0xf]
    %v145 = vld [vmem:[#allocation2 + $0x10] sm:$0xf]
    %v146 = vld [vmem:[#allocation2 + $0x14] sm:$0xf]
    %v147 = vld [vmem:[#allocation2 + $0x18] sm:$0xf]
    %v148 = vld [vmem:[#allocation2 + $0x1c] sm:$0xf]
    %v149 = vld [vmem:[#allocation2 + $0x20] sm:$0xf]
    %v150 = vld [vmem:[#allocation2 + $0x24] sm:$0xf]
    %v151 = vld [vmem:[#allocation2 + $0x28] sm:$0xf]
    %v152 = vld [vmem:[#allocation2 + $0x2c] sm:$0xf]
    %v153 = vld [vmem:[#allocation2 + $0x30] sm:$0xf]
    %v154 = vld [vmem:[#allocation2 + $0x34] sm:$0xf]
    %v155 = vld [vmem:[#allocation2 + $0x38] sm:$0xf]
    %v156 = vld [vmem:[#allocation2 + $0x3c] sm:$0xf]
    %v157 = vld [vmem:[%s2] sm:$0x1]
    %v159 = vperm.slane %v157, 0
    %v177 = vunpack.c.l.b16 %v141
    %v178 = vunpack.c.l.b16 %v142
    %v179 = vunpack.c.l.b16 %v143
    %v180 = vunpack.c.l.b16 %v144
    %v181 = vunpack.c.l.b16 %v145
    %v182 = vunpack.c.l.b16 %v146
    %v183 = vunpack.c.l.b16 %v147
    %v184 = vunpack.c.l.b16 %v148
    %v185 = vunpack.c.l.b16 %v149
    %v186 = vunpack.c.l.b16 %v150
    %v187 = vunpack.c.l.b16 %v151
    %v188 = vunpack.c.l.b16 %v152
    %v189 = vunpack.c.l.b16 %v153
    %v190 = vunpack.c.l.b16 %v154
    %v191 = vunpack.c.l.b16 %v155
    %v192 = vunpack.c.l.b16 %v156
    %v193 = vpack.c.b16 %v178, %v177
    %v194 = vpack.c.b16 %v180, %v179
    %v195 = vpack.c.b16 %v182, %v181
    %v196 = vpack.c.b16 %v184, %v183
    %v197 = vpack.c.b16 %v186, %v185
    %v198 = vpack.c.b16 %v188, %v187
    %v199 = vpack.c.b16 %v190, %v189
    %v200 = vpack.c.b16 %v192, %v191
    %209 = vmatpush.bf16.msra.mxu0 %v200
    %210 = vmatpush.bf16.msra.mxu0 %v199
    %211 = vmatpush.bf16.msra.mxu0 %v198
    %212 = vmatpush.bf16.msra.mxu0 %v197
    %213 = vmatpush.bf16.msra.mxu0 %v196
    %214 = vmatpush.bf16.msra.mxu0 %v195
    %215 = vmatpush.bf16.msra.mxu0 %v194
    %216 = vmatpush.bf16.msra.mxu0 %v193
    %217 = vmatmul.bf16.gmra.mxu0 %v140
    %v218 = vpop.f32.mrf.mxu0
    %v219 = vadd.f32 %v159, %v218
    %v220 = vpop.f32.mrf.mxu0
    %221 = vdwg.mxu0
    %v222 = vmax.f32 %v219, 0.0
    %v223 = vpack.c.bf16 %v222, %v222
    %v224 = vld [vmem:[#allocation5] sm:$0xf]
    %v225 = vld [vmem:[#allocation5 + $0x4] sm:$0xf]
    %v226 = vld [vmem:[#allocation5 + $0x8] sm:$0xf]
    %v227 = vld [vmem:[#allocation5 + $0xc] sm:$0xf]
    %v228 = vld [vmem:[#allocation5 + $0x10] sm:$0xf]
    %v229 = vld [vmem:[#allocation5 + $0x14] sm:$0xf]
    %v230 = vld [vmem:[#allocation5 + $0x18] sm:$0xf]
    %v231 = vld [vmem:[#allocation5 + $0x1c] sm:$0xf]
    %v232 = vld [vmem:[#allocation5 + $0x20] sm:$0xf]
    %v233 = vld [vmem:[#allocation5 + $0x24] sm:$0xf]
    %v234 = vld [vmem:[#allocation5 + $0x28] sm:$0xf]
    %v235 = vld [vmem:[#allocation5 + $0x2c] sm:$0xf]
    %v236 = vld [vmem:[#allocation5 + $0x30] sm:$0xf]
    %v237 = vld [vmem:[#allocation5 + $0x34] sm:$0xf]
    %v238 = vld [vmem:[#allocation5 + $0x38] sm:$0xf]
    %v239 = vld [vmem:[#allocation5 + $0x3c] sm:$0xf]
    %v240 = vld [vmem:[%s4] sm:$0x1]
    %v242 = vperm.slane %v240, 0
    %v260 = vunpack.c.l.b16 %v224
    %v261 = vunpack.c.l.b16 %v225
    %v262 = vunpack.c.l.b16 %v226
    %v263 = vunpack.c.l.b16 %v227
    %v264 = vunpack.c.l.b16 %v228
    %v265 = vunpack.c.l.b16 %v229
    %v266 = vunpack.c.l.b16 %v230
    %v267 = vunpack.c.l.b16 %v231
    %v268 = vunpack.c.l.b16 %v232
    %v269 = vunpack.c.l.b16 %v233
    %v270 = vunpack.c.l.b16 %v234
    %v271 = vunpack.c.l.b16 %v235
    %v272 = vunpack.c.l.b16 %v236
    %v273 = vunpack.c.l.b16 %v237
    %v274 = vunpack.c.l.b16 %v238
    %v275 = vunpack.c.l.b16 %v239
    %v276 = vpack.c.b16 %v261, %v260
    %v277 = vpack.c.b16 %v263, %v262
    %v278 = vpack.c.b16 %v265, %v264
    %v279 = vpack.c.b16 %v267, %v266
    %v280 = vpack.c.b16 %v269, %v268
    %v281 = vpack.c.b16 %v271, %v270
    %v282 = vpack.c.b16 %v273, %v272
    %v283 = vpack.c.b16 %v275, %v274
    %292 = vmatpush.bf16.msra.mxu0 %v283
    %293 = vmatpush.bf16.msra.mxu0 %v282
    %294 = vmatpush.bf16.msra.mxu0 %v281
    %295 = vmatpush.bf16.msra.mxu0 %v280
    %296 = vmatpush.bf16.msra.mxu0 %v279
    %297 = vmatpush.bf16.msra.mxu0 %v278
    %298 = vmatpush.bf16.msra.mxu0 %v277
    %299 = vmatpush.bf16.msra.mxu0 %v276
    %300 = vmatmul.bf16.gmra.mxu0 %v223
    %v301 = vpop.f32.mrf.mxu0
    %v302 = vadd.f32 %v242, %v301
    %v303 = vpop.f32.mrf.mxu0
    %304 = vdwg.mxu0
    %v305 = vmax.f32 %v302, 0.0
    %v306 = vpack.c.bf16 %v305, %v305
    %v307 = vld [vmem:[#allocation7] sm:$0xf]
    %v308 = vld [vmem:[#allocation7 + $0x4] sm:$0xf]
    %v309 = vld [vmem:[#allocation7 + $0x8] sm:$0xf]
    %v310 = vld [vmem:[#allocation7 + $0xc] sm:$0xf]
    %v311 = vld [vmem:[#allocation7 + $0x10] sm:$0xf]
    %v312 = vld [vmem:[#allocation7 + $0x14] sm:$0xf]
    %v313 = vld [vmem:[#allocation7 + $0x18] sm:$0xf]
    %v314 = vld [vmem:[#allocation7 + $0x1c] sm:$0xf]
    %v315 = vld [vmem:[#allocation7 + $0x20] sm:$0xf]
    %v316 = vld [vmem:[#allocation7 + $0x24] sm:$0xf]
    %v317 = vld [vmem:[#allocation7 + $0x28] sm:$0xf]
    %v318 = vld [vmem:[#allocation7 + $0x2c] sm:$0xf]
    %v319 = vld [vmem:[#allocation7 + $0x30] sm:$0xf]
    %v320 = vld [vmem:[#allocation7 + $0x34] sm:$0xf]
    %v321 = vld [vmem:[#allocation7 + $0x38] sm:$0xf]
    %v322 = vld [vmem:[#allocation7 + $0x3c] sm:$0xf]
    %v323 = vld [vmem:[%s6] sm:$0x1]
    %v325 = vperm.slane %v323, 0
    %v343 = vunpack.c.l.b16 %v307
    %v344 = vunpack.c.l.b16 %v308
    %v345 = vunpack.c.l.b16 %v309
    %v346 = vunpack.c.l.b16 %v310
    %v347 = vunpack.c.l.b16 %v311
    %v348 = vunpack.c.l.b16 %v312
    %v349 = vunpack.c.l.b16 %v313
    %v350 = vunpack.c.l.b16 %v314
    %v351 = vunpack.c.l.b16 %v315
    %v352 = vunpack.c.l.b16 %v316
    %v353 = vunpack.c.l.b16 %v317
    %v354 = vunpack.c.l.b16 %v318
    %v355 = vunpack.c.l.b16 %v319
    %v356 = vunpack.c.l.b16 %v320
    %v357 = vunpack.c.l.b16 %v321
    %v358 = vunpack.c.l.b16 %v322
    %v359 = vpack.c.b16 %v344, %v343
    %v360 = vpack.c.b16 %v346, %v345
    %v361 = vpack.c.b16 %v348, %v347
    %v362 = vpack.c.b16 %v350, %v349
    %v363 = vpack.c.b16 %v352, %v351
    %v364 = vpack.c.b16 %v354, %v353
    %v365 = vpack.c.b16 %v356, %v355
    %v366 = vpack.c.b16 %v358, %v357
    %375 = vmatpush.bf16.msra.mxu0 %v366
    %376 = vmatpush.bf16.msra.mxu0 %v365
    %377 = vmatpush.bf16.msra.mxu0 %v364
    %378 = vmatpush.bf16.msra.mxu0 %v363
    %379 = vmatpush.bf16.msra.mxu0 %v362
    %380 = vmatpush.bf16.msra.mxu0 %v361
    %381 = vmatpush.bf16.msra.mxu0 %v360
    %382 = vmatpush.bf16.msra.mxu0 %v359
    %383 = vmatmul.bf16.gmra.mxu0 %v306
    %v384 = vpop.f32.mrf.mxu0
    %v385 = vadd.f32 %v325, %v384
    %v386 = vpop.f32.mrf.mxu0
    %387 = vdwg.mxu0
    %v388 = vmax.f32 %v385, 0.0
    %v389 = vpack.c.bf16 %v388, %v388
    %v390 = vld [vmem:[#allocation8] sm:$0xf]
    %v391 = vld [vmem:[#allocation8 + $0x4] sm:$0xf]
    %v392 = vld [vmem:[#allocation8 + $0x8] sm:$0xf]
    %v393 = vld [vmem:[#allocation8 + $0xc] sm:$0xf]
    %v394 = vld [vmem:[#allocation8 + $0x10] sm:$0xf]
    %v395 = vld [vmem:[#allocation8 + $0x14] sm:$0xf]
    %v396 = vld [vmem:[#allocation8 + $0x18] sm:$0xf]
    %v397 = vld [vmem:[#allocation8 + $0x1c] sm:$0xf]
    %v398 = vld [vmem:[#allocation8 + $0x20] sm:$0xf]
    %v399 = vld [vmem:[#allocation8 + $0x24] sm:$0xf]
    %v400 = vld [vmem:[#allocation8 + $0x28] sm:$0xf]
    %v401 = vld [vmem:[#allocation8 + $0x2c] sm:$0xf]
    %v402 = vld [vmem:[#allocation8 + $0x30] sm:$0xf]
    %v403 = vld [vmem:[#allocation8 + $0x34] sm:$0xf]
    %v404 = vld [vmem:[#allocation8 + $0x38] sm:$0xf]
    %v405 = vld [vmem:[#allocation8 + $0x3c] sm:$0xf]
    %v406 = vld [vmem:[%s8] sm:$0x1]
    %v408 = vperm.slane %v406, 0
    %v426 = vunpack.c.l.b16 %v390
    %v427 = vunpack.c.l.b16 %v391
    %v428 = vunpack.c.l.b16 %v392
    %v429 = vunpack.c.l.b16 %v393
    %v430 = vunpack.c.l.b16 %v394
    %v431 = vunpack.c.l.b16 %v395
    %v432 = vunpack.c.l.b16 %v396
    %v433 = vunpack.c.l.b16 %v397
    %v434 = vunpack.c.l.b16 %v398
    %v435 = vunpack.c.l.b16 %v399
    %v436 = vunpack.c.l.b16 %v400
    %v437 = vunpack.c.l.b16 %v401
    %v438 = vunpack.c.l.b16 %v402
    %v439 = vunpack.c.l.b16 %v403
    %v440 = vunpack.c.l.b16 %v404
    %v441 = vunpack.c.l.b16 %v405
    %v442 = vpack.c.b16 %v427, %v426
    %v443 = vpack.c.b16 %v429, %v428
    %v444 = vpack.c.b16 %v431, %v430
    %v445 = vpack.c.b16 %v433, %v432
    %v446 = vpack.c.b16 %v435, %v434
    %v447 = vpack.c.b16 %v437, %v436
    %v448 = vpack.c.b16 %v439, %v438
    %v449 = vpack.c.b16 %v441, %v440
    %458 = vmatpush.bf16.msra.mxu0 %v449
    %459 = vmatpush.bf16.msra.mxu0 %v448
    %460 = vmatpush.bf16.msra.mxu0 %v447
    %461 = vmatpush.bf16.msra.mxu0 %v446
    %462 = vmatpush.bf16.msra.mxu0 %v445
    %463 = vmatpush.bf16.msra.mxu0 %v444
    %464 = vmatpush.bf16.msra.mxu0 %v443
    %465 = vmatpush.bf16.msra.mxu0 %v442
    %466 = vmatmul.bf16.gmra.mxu0 %v389
    %v467 = vpop.f32.mrf.mxu0
    %v468 = vadd.f32 %v408, %v467
    %v469 = vpop.f32.mrf.mxu0
    %470 = vdwg.mxu0
    %v471 = vmax.f32 %v468, 0.0
    %v472 = vpack.c.bf16 %v471, %v471
    %v473 = vld [vmem:[#allocation10] sm:$0xf]
    %v474 = vld [vmem:[#allocation10 + $0x4] sm:$0xf]
    %v475 = vld [vmem:[#allocation10 + $0x8] sm:$0xf]
    %v476 = vld [vmem:[#allocation10 + $0xc] sm:$0xf]
    %v477 = vld [vmem:[#allocation10 + $0x10] sm:$0xf]
    %v478 = vld [vmem:[#allocation10 + $0x14] sm:$0xf]
    %v479 = vld [vmem:[#allocation10 + $0x18] sm:$0xf]
    %v480 = vld [vmem:[#allocation10 + $0x1c] sm:$0xf]
    %v481 = vld [vmem:[#allocation10 + $0x20] sm:$0xf]
    %v482 = vld [vmem:[#allocation10 + $0x24] sm:$0xf]
    %v483 = vld [vmem:[#allocation10 + $0x28] sm:$0xf]
    %v484 = vld [vmem:[#allocation10 + $0x2c] sm:$0xf]
    %v485 = vld [vmem:[#allocation10 + $0x30] sm:$0xf]
    %v486 = vld [vmem:[#allocation10 + $0x34] sm:$0xf]
    %v487 = vld [vmem:[#allocation10 + $0x38] sm:$0xf]
    %v488 = vld [vmem:[#allocation10 + $0x3c] sm:$0xf]
    %v489 = vld [vmem:[%s10] sm:$0x1]
    %v491 = vperm.slane %v489, 0
    %v509 = vunpack.c.l.b16 %v473
    %v510 = vunpack.c.l.b16 %v474
    %v511 = vunpack.c.l.b16 %v475
    %v512 = vunpack.c.l.b16 %v476
    %v513 = vunpack.c.l.b16 %v477
    %v514 = vunpack.c.l.b16 %v478
    %v515 = vunpack.c.l.b16 %v479
    %v516 = vunpack.c.l.b16 %v480
    %v517 = vunpack.c.l.b16 %v481
    %v518 = vunpack.c.l.b16 %v482
    %v519 = vunpack.c.l.b16 %v483
    %v520 = vunpack.c.l.b16 %v484
    %v521 = vunpack.c.l.b16 %v485
    %v522 = vunpack.c.l.b16 %v486
    %v523 = vunpack.c.l.b16 %v487
    %v524 = vunpack.c.l.b16 %v488
    %v525 = vpack.c.b16 %v510, %v509
    %v526 = vpack.c.b16 %v512, %v511
    %v527 = vpack.c.b16 %v514, %v513
    %v528 = vpack.c.b16 %v516, %v515
    %v529 = vpack.c.b16 %v518, %v517
    %v530 = vpack.c.b16 %v520, %v519
    %v531 = vpack.c.b16 %v522, %v521
    %v532 = vpack.c.b16 %v524, %v523
    %541 = vmatpush.bf16.msra.mxu0 %v532
    %542 = vmatpush.bf16.msra.mxu0 %v531
    %543 = vmatpush.bf16.msra.mxu0 %v530
    %544 = vmatpush.bf16.msra.mxu0 %v529
    %545 = vmatpush.bf16.msra.mxu0 %v528
    %546 = vmatpush.bf16.msra.mxu0 %v527
    %547 = vmatpush.bf16.msra.mxu0 %v526
    %548 = vmatpush.bf16.msra.mxu0 %v525
    %549 = vmatmul.bf16.gmra.mxu0 %v472
    %v550 = vpop.f32.mrf.mxu0
    %v551 = vadd.f32 %v491, %v550
    %v552 = vpop.f32.mrf.mxu0
    %553 = vdwg.mxu0
    %v554 = vmax.f32 %v551, 0.0
    %v555 = vpack.c.bf16 %v554, %v554
    %v556 = vld [vmem:[#allocation11] sm:$0xf]
    %v557 = vld [vmem:[#allocation11 + $0x4] sm:$0xf]
    %v558 = vld [vmem:[#allocation11 + $0x8] sm:$0xf]
    %v559 = vld [vmem:[#allocation11 + $0xc] sm:$0xf]
    %v560 = vld [vmem:[#allocation11 + $0x10] sm:$0xf]
    %v561 = vld [vmem:[#allocation11 + $0x14] sm:$0xf]
    %v562 = vld [vmem:[#allocation11 + $0x18] sm:$0xf]
    %v563 = vld [vmem:[#allocation11 + $0x1c] sm:$0xf]
    %v564 = vld [vmem:[#allocation11 + $0x20] sm:$0xf]
    %v565 = vld [vmem:[#allocation11 + $0x24] sm:$0xf]
    %v566 = vld [vmem:[#allocation11 + $0x28] sm:$0xf]
    %v567 = vld [vmem:[#allocation11 + $0x2c] sm:$0xf]
    %v568 = vld [vmem:[#allocation11 + $0x30] sm:$0xf]
    %v569 = vld [vmem:[#allocation11 + $0x34] sm:$0xf]
    %v570 = vld [vmem:[#allocation11 + $0x38] sm:$0xf]
    %v571 = vld [vmem:[#allocation11 + $0x3c] sm:$0xf]
    %v572 = vld [vmem:[%s12] sm:$0x1]
    %v574 = vperm.slane %v572, 0
    %v592 = vunpack.c.l.b16 %v556
    %v593 = vunpack.c.l.b16 %v557
    %v594 = vunpack.c.l.b16 %v558
    %v595 = vunpack.c.l.b16 %v559
    %v596 = vunpack.c.l.b16 %v560
    %v597 = vunpack.c.l.b16 %v561
    %v598 = vunpack.c.l.b16 %v562
    %v599 = vunpack.c.l.b16 %v563
    %v600 = vunpack.c.l.b16 %v564
    %v601 = vunpack.c.l.b16 %v565
    %v602 = vunpack.c.l.b16 %v566
    %v603 = vunpack.c.l.b16 %v567
    %v604 = vunpack.c.l.b16 %v568
    %v605 = vunpack.c.l.b16 %v569
    %v606 = vunpack.c.l.b16 %v570
    %v607 = vunpack.c.l.b16 %v571
    %v608 = vpack.c.b16 %v593, %v592
    %v609 = vpack.c.b16 %v595, %v594
    %v610 = vpack.c.b16 %v597, %v596
    %v611 = vpack.c.b16 %v599, %v598
    %v612 = vpack.c.b16 %v601, %v600
    %v613 = vpack.c.b16 %v603, %v602
    %v614 = vpack.c.b16 %v605, %v604
    %v615 = vpack.c.b16 %v607, %v606
    %624 = vmatpush.bf16.msra.mxu0 %v615
    %625 = vmatpush.bf16.msra.mxu0 %v614
    %626 = vmatpush.bf16.msra.mxu0 %v613
    %627 = vmatpush.bf16.msra.mxu0 %v612
    %628 = vmatpush.bf16.msra.mxu0 %v611
    %629 = vmatpush.bf16.msra.mxu0 %v610
    %630 = vmatpush.bf16.msra.mxu0 %v609
    %631 = vmatpush.bf16.msra.mxu0 %v608
    %632 = vmatmul.bf16.gmra.mxu0 %v555
    %v633 = vpop.f32.mrf.mxu0
    %v634 = vadd.f32 %v574, %v633
    %v635 = vpop.f32.mrf.mxu0
    %636 = vdwg.mxu0
    %v637 = vmax.f32 %v634, 0.0
    %638 = vst [vmem:[#allocation13] sm:$0xff] %v637
    // Predicated region
    $region78: #{autoencoder_forward.1} parent=1 // pred_check
      _
    $region79: #{autoencoder_forward.1} parent=1 // pred_check_branch
      %640 = sbr.rel (0) target = $region81
    $region80: #{autoencoder_forward.1} parent=1 // pred_region
      %642 = vsyncadd [#allocation4], 0
      %s644 = sshll.u32 [#allocation13], 4
      %s645 = int_to_ptr.vmem [resolvable:$true] %s644
      %s646 = sshll.u32 %s13, 4
      %s647 = int_to_ptr.hbm [resolvable:$true] %s646
      %649 = dma.vmem_to_hbm [thread:$0]  %s645, 128, %s647, [#allocation4]
    $region81: #{autoencoder_forward.1} parent=1 // pred_fallthru
      _
    // Predicated region
    $region82: #{autoencoder_forward.1} parent=1 // pred_check
      _
    $region83: #{autoencoder_forward.1} parent=1 // pred_check_branch
      %651 = sbr.rel (0) target = $region85
    $region84: #{autoencoder_forward.1} parent=1 // pred_region
      %653 = dma.done [#allocation4], 128
    $region85: #{autoencoder_forward.1} parent=1 // pred_fallthru
      _
    %654 = vsyncpa [#allocation3], 1
    %655 = vsyncpa [#allocation6], 1
    %656 = vsyncpa [#allocation9], 1
    %657 = vsyncpa [#allocation12], 1
    %658 = vsyncpa [#allocation4], 1

// kernel: autoencoder_forward.1
$region0: #{autoencoder_forward.1}
  #allocation0 [shape = 'u32[]', space=smem, size = 0x4, offset = 0x4, fixed_abs, tag = 'smem constant byte address 0x4 - core index']
  #allocation1 [shape = 'u32[72,128]{1,0:T(1,128)}', space=vmem, size = 0x9000, scoped, tag = 'internal scratch']
  %s0 = inlined_call_operand.vmem [shape: f32[8,128], index: 0, kind: input, shape index: {}]
  %s1 = inlined_call_operand.hbm [shape: bf16[128,128], index: 1, kind: input, shape index: {}]
  %s2 = inlined_call_operand.vmem [shape: f32[1,128], index: 2, kind: input, shape index: {}]
  %s3 = inlined_call_operand.hbm [shape: bf16[128,128], index: 3, kind: input, shape index: {}]
  %s4 = inlined_call_operand.vmem [shape: f32[1,128], index: 4, kind: input, shape index: {}]
  %s5 = inlined_call_operand.hbm [shape: bf16[128,128], index: 5, kind: input, shape index: {}]
  %s6 = inlined_call_operand.vmem [shape: f32[1,128], index: 6, kind: input, shape index: {}]
  %s7 = inlined_call_operand.hbm [shape: bf16[128,128], index: 7, kind: input, shape index: {}]
  %s8 = inlined_call_operand.vmem [shape: f32[1,128], index: 8, kind: input, shape index: {}]
  %s9 = inlined_call_operand.hbm [shape: bf16[128,128], index: 9, kind: input, shape index: {}]
  %s10 = inlined_call_operand.vmem [shape: f32[1,128], index: 10, kind: input, shape index: {}]
  %s11 = inlined_call_operand.hbm [shape: bf16[128,128], index: 11, kind: input, shape index: {}]
  %s12 = inlined_call_operand.vmem [shape: f32[1,128], index: 12, kind: input, shape index: {}]
  %s13 = inlined_call_operand.hbm [shape: f32[8,128], index: 13, kind: output, shape index: {}]
  %s14 = sld [smem:[#allocation0]]
  $region86: #{autoencoder_forward.1} parent=0
    _
  %s16 = ssub.s32 1, %s14
  %s17 = scalar_select 0, %s16, %s14
  $region1: #{autoencoder_forward.1} parent=0
    #allocation2 [shape = 'u8[32768]{0}', space=vmem, size = 0x8000, scoped, tag = 'input window, operand 1, single buffered']
    #allocation3 [shape = 's32[1]{0}', space=sflag, size = 0x4, scoped, tag = 'scoped memory for autoencoder_forward.1']
    #allocation4 [shape = 's32[1]{0}', space=sflag, size = 0x4, scoped, tag = 'scoped memory for autoencoder_forward.1']
    #allocation5 [shape = 'u8[32768]{0}', space=vmem, size = 0x8000, scoped, tag = 'input window, operand 3, single buffered']
    #allocation6 [shape = 's32[1]{0}', space=sflag, size = 0x4, scoped, tag = 'scoped memory for autoencoder_forward.1']
    #allocation7 [shape = 'u8[32768]{0}', space=vmem, size = 0x8000, scoped, tag = 'input window, operand 5, single buffered']
    #allocation8 [shape = 'u8[32768]{0}', space=vmem, size = 0x8000, scoped, tag = 'input window, operand 7, single buffered']
    #allocation9 [shape = 's32[1]{0}', space=sflag, size = 0x4, scoped, tag = 'scoped memory for autoencoder_forward.1']
    #allocation10 [shape = 'u8[32768]{0}', space=vmem, size = 0x8000, scoped, tag = 'input window, operand 9, single buffered']
    #allocation11 [shape = 'u8[32768]{0}', space=vmem, size = 0x8000, scoped, tag = 'input window, operand 11, single buffered']
    #allocation12 [shape = 's32[1]{0}', space=sflag, size = 0x4, scoped, tag = 'scoped memory for autoencoder_forward.1']
    #allocation13 [shape = 'u8[4096]{0}', space=vmem, size = 0x1000, scoped, tag = 'output window, operand 0, single buffered']
    %18 = vsyncpa [#allocation3], 0
    %19 = vsyncpa [#allocation6], 0
    %20 = vsyncpa [#allocation9], 0
    %21 = vsyncpa [#allocation12], 0
    %22 = vsyncpa [#allocation4], 0
    // Predicated region
    $region2: #{autoencoder_forward.1} parent=1 // pred_check
      _
    $region3: #{autoencoder_forward.1} parent=1 // pred_check_branch
      %24 = sbr.rel (0) target = $region5
    $region4: #{autoencoder_forward.1} parent=1 // pred_region
      _
    $region5: #{autoencoder_forward.1} parent=1 // pred_fallthru
      _
    // Predicated region
    $region6: #{autoencoder_forward.1} parent=1 // pred_check
      _
    $region7: #{autoencoder_forward.1} parent=1 // pred_check_branch
      %26 = sbr.rel (0) target = $region9
    $region8: #{autoencoder_forward.1} parent=1 // pred_region
      %28 = vsyncadd [#allocation3], 0
      %s29 = sshll.u32 %s1, 4
      %s30 = int_to_ptr.hbm [resolvable:$true] %s29
      %s31 = sshll.u32 [#allocation2], 4
      %s32 = int_to_ptr.vmem [resolvable:$true] %s31
      %37 = dma.hbm_to_vmem [thread:$0]  %s30, 1024, %s32, [#allocation3], 64, 64, 4
    $region9: #{autoencoder_forward.1} parent=1 // pred_fallthru
      _
    // Predicated region
    $region10: #{autoencoder_forward.1} parent=1 // pred_check
      _
    $region11: #{autoencoder_forward.1} parent=1 // pred_check_branch
      %39 = sbr.rel (0) target = $region13
    $region12: #{autoencoder_forward.1} parent=1 // pred_region
      _
    $region13: #{autoencoder_forward.1} parent=1 // pred_fallthru
      _
    // Predicated region
    $region14: #{autoencoder_forward.1} parent=1 // pred_check
      _
    $region15: #{autoencoder_forward.1} parent=1 // pred_check_branch
      %41 = sbr.rel (0) target = $region17
    $region16: #{autoencoder_forward.1} parent=1 // pred_region
      %43 = vsyncadd [#allocation6], 0
      %s44 = sshll.u32 %s3, 4
      %s45 = int_to_ptr.hbm [resolvable:$true] %s44
      %s46 = sshll.u32 [#allocation5], 4
      %s47 = int_to_ptr.vmem [resolvable:$true] %s46
      %52 = dma.hbm_to_vmem [thread:$0]  %s45, 1024, %s47, [#allocation6], 64, 64, 4
    $region17: #{autoencoder_forward.1} parent=1 // pred_fallthru
      _
    // Predicated region
    $region18: #{autoencoder_forward.1} parent=1 // pred_check
      _
    $region19: #{autoencoder_forward.1} parent=1 // pred_check_branch
      %54 = sbr.rel (0) target = $region21
    $region20: #{autoencoder_forward.1} parent=1 // pred_region
      _
    $region21: #{autoencoder_forward.1} parent=1 // pred_fallthru
      _
    // Predicated region
    $region22: #{autoencoder_forward.1} parent=1 // pred_check
      _
    $region23: #{autoencoder_forward.1} parent=1 // pred_check_branch
      %56 = sbr.rel (0) target = $region25
    $region24: #{autoencoder_forward.1} parent=1 // pred_region
      %58 = vsyncadd [#allocation6], 0
      %s59 = sshll.u32 %s5, 4
      %s60 = int_to_ptr.hbm [resolvable:$true] %s59
      %s61 = sshll.u32 [#allocation7], 4
      %s62 = int_to_ptr.vmem [resolvable:$true] %s61
      %67 = dma.hbm_to_vmem [thread:$0]  %s60, 1024, %s62, [#allocation6], 64, 64, 4
    $region25: #{autoencoder_forward.1} parent=1 // pred_fallthru
      _
    // Predicated region
    $region26: #{autoencoder_forward.1} parent=1 // pred_check
      _
    $region27: #{autoencoder_forward.1} parent=1 // pred_check_branch
      %69 = sbr.rel (0) target = $region29
    $region28: #{autoencoder_forward.1} parent=1 // pred_region
      _
    $region29: #{autoencoder_forward.1} parent=1 // pred_fallthru
      _
    // Predicated region
    $region30: #{autoencoder_forward.1} parent=1 // pred_check
      _
    $region31: #{autoencoder_forward.1} parent=1 // pred_check_branch
      %71 = sbr.rel (0) target = $region33
    $region32: #{autoencoder_forward.1} parent=1 // pred_region
      %73 = vsyncadd [#allocation9], 0
      %s74 = sshll.u32 %s7, 4
      %s75 = int_to_ptr.hbm [resolvable:$true] %s74
      %s76 = sshll.u32 [#allocation8], 4
      %s77 = int_to_ptr.vmem [resolvable:$true] %s76
      %82 = dma.hbm_to_vmem [thread:$0]  %s75, 1024, %s77, [#allocation9], 64, 64, 4
    $region33: #{autoencoder_forward.1} parent=1 // pred_fallthru
      _
    // Predicated region
    $region34: #{autoencoder_forward.1} parent=1 // pred_check
      _
    $region35: #{autoencoder_forward.1} parent=1 // pred_check_branch
      %84 = sbr.rel (0) target = $region37
    $region36: #{autoencoder_forward.1} parent=1 // pred_region
      _
    $region37: #{autoencoder_forward.1} parent=1 // pred_fallthru
      _
    // Predicated region
    $region38: #{autoencoder_forward.1} parent=1 // pred_check
      _
    $region39: #{autoencoder_forward.1} parent=1 // pred_check_branch
      %86 = sbr.rel (0) target = $region41
    $region40: #{autoencoder_forward.1} parent=1 // pred_region
      %88 = vsyncadd [#allocation9], 0
      %s89 = sshll.u32 %s9, 4
      %s90 = int_to_ptr.hbm [resolvable:$true] %s89
      %s91 = sshll.u32 [#allocation10], 4
      %s92 = int_to_ptr.vmem [resolvable:$true] %s91
      %97 = dma.hbm_to_vmem [thread:$0]  %s90, 1024, %s92, [#allocation9], 64, 64, 4
    $region41: #{autoencoder_forward.1} parent=1 // pred_fallthru
      _
    // Predicated region
    $region42: #{autoencoder_forward.1} parent=1 // pred_check
      _
    $region43: #{autoencoder_forward.1} parent=1 // pred_check_branch
      %99 = sbr.rel (0) target = $region45
    $region44: #{autoencoder_forward.1} parent=1 // pred_region
      _
    $region45: #{autoencoder_forward.1} parent=1 // pred_fallthru
      _
    // Predicated region
    $region46: #{autoencoder_forward.1} parent=1 // pred_check
      _
    $region47: #{autoencoder_forward.1} parent=1 // pred_check_branch
      %101 = sbr.rel (0) target = $region49
    $region48: #{autoencoder_forward.1} parent=1 // pred_region
      %103 = vsyncadd [#allocation12], 0
      %s104 = sshll.u32 %s11, 4
      %s105 = int_to_ptr.hbm [resolvable:$true] %s104
      %s106 = sshll.u32 [#allocation11], 4
      %s107 = int_to_ptr.vmem [resolvable:$true] %s106
      %112 = dma.hbm_to_vmem [thread:$0]  %s105, 1024, %s107, [#allocation12], 64, 64, 4
    $region49: #{autoencoder_forward.1} parent=1 // pred_fallthru
      _
    // Predicated region
    $region50: #{autoencoder_forward.1} parent=1 // pred_check
      _
    $region51: #{autoencoder_forward.1} parent=1 // pred_check_branch
      %114 = sbr.rel (0) target = $region53
    $region52: #{autoencoder_forward.1} parent=1 // pred_region
      _
    $region53: #{autoencoder_forward.1} parent=1 // pred_fallthru
      _
    // Predicated region
    $region54: #{autoencoder_forward.1} parent=1 // pred_check
      _
    $region55: #{autoencoder_forward.1} parent=1 // pred_check_branch
      %116 = sbr.rel (0) target = $region57
    $region56: #{autoencoder_forward.1} parent=1 // pred_region
      %118 = dma.done [#allocation3], 1024
    $region57: #{autoencoder_forward.1} parent=1 // pred_fallthru
      _
    // Predicated region
    $region58: #{autoencoder_forward.1} parent=1 // pred_check
      _
    $region59: #{autoencoder_forward.1} parent=1 // pred_check_branch
      %120 = sbr.rel (0) target = $region61
    $region60: #{autoencoder_forward.1} parent=1 // pred_region
      %122 = dma.done [#allocation6], 1024
    $region61: #{autoencoder_forward.1} parent=1 // pred_fallthru
      _
    // Predicated region
    $region62: #{autoencoder_forward.1} parent=1 // pred_check
      _
    $region63: #{autoencoder_forward.1} parent=1 // pred_check_branch
      %124 = sbr.rel (0) target = $region65
    $region64: #{autoencoder_forward.1} parent=1 // pred_region
      %126 = dma.done [#allocation6], 1024
    $region65: #{autoencoder_forward.1} parent=1 // pred_fallthru
      _
    // Predicated region
    $region66: #{autoencoder_forward.1} parent=1 // pred_check
      _
    $region67: #{autoencoder_forward.1} parent=1 // pred_check_branch
      %128 = sbr.rel (0) target = $region69
    $region68: #{autoencoder_forward.1} parent=1 // pred_region
      %130 = dma.done [#allocation9], 1024
    $region69: #{autoencoder_forward.1} parent=1 // pred_fallthru
      _
    // Predicated region
    $region70: #{autoencoder_forward.1} parent=1 // pred_check
      _
    $region71: #{autoencoder_forward.1} parent=1 // pred_check_branch
      %132 = sbr.rel (0) target = $region73
    $region72: #{autoencoder_forward.1} parent=1 // pred_region
      %134 = dma.done [#allocation9], 1024
    $region73: #{autoencoder_forward.1} parent=1 // pred_fallthru
      _
    // Predicated region
    $region74: #{autoencoder_forward.1} parent=1 // pred_check
      _
    $region75: #{autoencoder_forward.1} parent=1 // pred_check_branch
      %136 = sbr.rel (0) target = $region77
    $region76: #{autoencoder_forward.1} parent=1 // pred_region
      %138 = dma.done [#allocation12], 1024
    $region77: #{autoencoder_forward.1} parent=1 // pred_fallthru
      _
    %v139 = vld [vmem:[%s0] sm:$0xff]
    %v140 = vpack.c.bf16 %v139, %v139
    %v141 = vld [vmem:[#allocation2] sm:$0xf]
    %v142 = vld [vmem:[#allocation2 + $0x4] sm:$0xf]
    %v143 = vld [vmem:[#allocation2 + $0x8] sm:$0xf]
    %v144 = vld [vmem:[#allocation2 + $0xc] sm:$0xf]
    %v145 = vld [vmem:[#allocation2 + $0x10] sm:$0xf]
    %v146 = vld [vmem:[#allocation2 + $0x14] sm:$0xf]
    %v147 = vld [vmem:[#allocation2 + $0x18] sm:$0xf]
    %v148 = vld [vmem:[#allocation2 + $0x1c] sm:$0xf]
    %v149 = vld [vmem:[#allocation2 + $0x20] sm:$0xf]
    %v150 = vld [vmem:[#allocation2 + $0x24] sm:$0xf]
    %v151 = vld [vmem:[#allocation2 + $0x28] sm:$0xf]
    %v152 = vld [vmem:[#allocation2 + $0x2c] sm:$0xf]
    %v153 = vld [vmem:[#allocation2 + $0x30] sm:$0xf]
    %v154 = vld [vmem:[#allocation2 + $0x34] sm:$0xf]
    %v155 = vld [vmem:[#allocation2 + $0x38] sm:$0xf]
    %v156 = vld [vmem:[#allocation2 + $0x3c] sm:$0xf]
    %v157 = vld [vmem:[%s2] sm:$0x1]
    %v159 = vperm.slane %v157, 0
    %v177 = vunpack.c.l.b16 %v141
    %v178 = vunpack.c.l.b16 %v142
    %v179 = vunpack.c.l.b16 %v143
    %v180 = vunpack.c.l.b16 %v144
    %v181 = vunpack.c.l.b16 %v145
    %v182 = vunpack.c.l.b16 %v146
    %v183 = vunpack.c.l.b16 %v147
    %v184 = vunpack.c.l.b16 %v148
    %v185 = vunpack.c.l.b16 %v149
    %v186 = vunpack.c.l.b16 %v150
    %v187 = vunpack.c.l.b16 %v151
    %v188 = vunpack.c.l.b16 %v152
    %v189 = vunpack.c.l.b16 %v153
    %v190 = vunpack.c.l.b16 %v154
    %v191 = vunpack.c.l.b16 %v155
    %v192 = vunpack.c.l.b16 %v156
    %v193 = vpack.c.b16 %v178, %v177
    %v194 = vpack.c.b16 %v180, %v179
    %v195 = vpack.c.b16 %v182, %v181
    %v196 = vpack.c.b16 %v184, %v183
    %v197 = vpack.c.b16 %v186, %v185
    %v198 = vpack.c.b16 %v188, %v187
    %v199 = vpack.c.b16 %v190, %v189
    %v200 = vpack.c.b16 %v192, %v191
    %209 = vmatpush.bf16.msra.mxu0 %v200
    %210 = vmatpush.bf16.msra.mxu0 %v199
    %211 = vmatpush.bf16.msra.mxu0 %v198
    %212 = vmatpush.bf16.msra.mxu0 %v197
    %213 = vmatpush.bf16.msra.mxu0 %v196
    %214 = vmatpush.bf16.msra.mxu0 %v195
    %215 = vmatpush.bf16.msra.mxu0 %v194
    %216 = vmatpush.bf16.msra.mxu0 %v193
    %217 = vmatmul.bf16.gmra.mxu0 %v140
    %v218 = vpop.f32.mrf.mxu0
    %v219 = vadd.f32 %v159, %v218
    %v220 = vpop.f32.mrf.mxu0
    %221 = vdwg.mxu0
    %v222 = vmax.f32 %v219, 0.0
    %v223 = vpack.c.bf16 %v222, %v222
    %v224 = vld [vmem:[#allocation5] sm:$0xf]
    %v225 = vld [vmem:[#allocation5 + $0x4] sm:$0xf]
    %v226 = vld [vmem:[#allocation5 + $0x8] sm:$0xf]
    %v227 = vld [vmem:[#allocation5 + $0xc] sm:$0xf]
    %v228 = vld [vmem:[#allocation5 + $0x10] sm:$0xf]
    %v229 = vld [vmem:[#allocation5 + $0x14] sm:$0xf]
    %v230 = vld [vmem:[#allocation5 + $0x18] sm:$0xf]
    %v231 = vld [vmem:[#allocation5 + $0x1c] sm:$0xf]
    %v232 = vld [vmem:[#allocation5 + $0x20] sm:$0xf]
    %v233 = vld [vmem:[#allocation5 + $0x24] sm:$0xf]
    %v234 = vld [vmem:[#allocation5 + $0x28] sm:$0xf]
    %v235 = vld [vmem:[#allocation5 + $0x2c] sm:$0xf]
    %v236 = vld [vmem:[#allocation5 + $0x30] sm:$0xf]
    %v237 = vld [vmem:[#allocation5 + $0x34] sm:$0xf]
    %v238 = vld [vmem:[#allocation5 + $0x38] sm:$0xf]
    %v239 = vld [vmem:[#allocation5 + $0x3c] sm:$0xf]
    %v240 = vld [vmem:[%s4] sm:$0x1]
    %v242 = vperm.slane %v240, 0
    %v260 = vunpack.c.l.b16 %v224
    %v261 = vunpack.c.l.b16 %v225
    %v262 = vunpack.c.l.b16 %v226
    %v263 = vunpack.c.l.b16 %v227
    %v264 = vunpack.c.l.b16 %v228
    %v265 = vunpack.c.l.b16 %v229
    %v266 = vunpack.c.l.b16 %v230
    %v267 = vunpack.c.l.b16 %v231
    %v268 = vunpack.c.l.b16 %v232
    %v269 = vunpack.c.l.b16 %v233
    %v270 = vunpack.c.l.b16 %v234
    %v271 = vunpack.c.l.b16 %v235
    %v272 = vunpack.c.l.b16 %v236
    %v273 = vunpack.c.l.b16 %v237
    %v274 = vunpack.c.l.b16 %v238
    %v275 = vunpack.c.l.b16 %v239
    %v276 = vpack.c.b16 %v261, %v260
    %v277 = vpack.c.b16 %v263, %v262
    %v278 = vpack.c.b16 %v265, %v264
    %v279 = vpack.c.b16 %v267, %v266
    %v280 = vpack.c.b16 %v269, %v268
    %v281 = vpack.c.b16 %v271, %v270
    %v282 = vpack.c.b16 %v273, %v272
    %v283 = vpack.c.b16 %v275, %v274
    %292 = vmatpush.bf16.msra.mxu0 %v283
    %293 = vmatpush.bf16.msra.mxu0 %v282
    %294 = vmatpush.bf16.msra.mxu0 %v281
    %295 = vmatpush.bf16.msra.mxu0 %v280
    %296 = vmatpush.bf16.msra.mxu0 %v279
    %297 = vmatpush.bf16.msra.mxu0 %v278
    %298 = vmatpush.bf16.msra.mxu0 %v277
    %299 = vmatpush.bf16.msra.mxu0 %v276
    %300 = vmatmul.bf16.gmra.mxu0 %v223
    %v301 = vpop.f32.mrf.mxu0
    %v302 = vadd.f32 %v242, %v301
    %v303 = vpop.f32.mrf.mxu0
    %304 = vdwg.mxu0
    %v305 = vmax.f32 %v302, 0.0
    %v306 = vpack.c.bf16 %v305, %v305
    %v307 = vld [vmem:[#allocation7] sm:$0xf]
    %v308 = vld [vmem:[#allocation7 + $0x4] sm:$0xf]
    %v309 = vld [vmem:[#allocation7 + $0x8] sm:$0xf]
    %v310 = vld [vmem:[#allocation7 + $0xc] sm:$0xf]
    %v311 = vld [vmem:[#allocation7 + $0x10] sm:$0xf]
    %v312 = vld [vmem:[#allocation7 + $0x14] sm:$0xf]
    %v313 = vld [vmem:[#allocation7 + $0x18] sm:$0xf]
    %v314 = vld [vmem:[#allocation7 + $0x1c] sm:$0xf]
    %v315 = vld [vmem:[#allocation7 + $0x20] sm:$0xf]
    %v316 = vld [vmem:[#allocation7 + $0x24] sm:$0xf]
    %v317 = vld [vmem:[#allocation7 + $0x28] sm:$0xf]
    %v318 = vld [vmem:[#allocation7 + $0x2c] sm:$0xf]
    %v319 = vld [vmem:[#allocation7 + $0x30] sm:$0xf]
    %v320 = vld [vmem:[#allocation7 + $0x34] sm:$0xf]
    %v321 = vld [vmem:[#allocation7 + $0x38] sm:$0xf]
    %v322 = vld [vmem:[#allocation7 + $0x3c] sm:$0xf]
    %v323 = vld [vmem:[%s6] sm:$0x1]
    %v325 = vperm.slane %v323, 0
    %v343 = vunpack.c.l.b16 %v307
    %v344 = vunpack.c.l.b16 %v308
    %v345 = vunpack.c.l.b16 %v309
    %v346 = vunpack.c.l.b16 %v310
    %v347 = vunpack.c.l.b16 %v311
    %v348 = vunpack.c.l.b16 %v312
    %v349 = vunpack.c.l.b16 %v313
    %v350 = vunpack.c.l.b16 %v314
    %v351 = vunpack.c.l.b16 %v315
    %v352 = vunpack.c.l.b16 %v316
    %v353 = vunpack.c.l.b16 %v317
    %v354 = vunpack.c.l.b16 %v318
    %v355 = vunpack.c.l.b16 %v319
    %v356 = vunpack.c.l.b16 %v320
    %v357 = vunpack.c.l.b16 %v321
    %v358 = vunpack.c.l.b16 %v322
    %v359 = vpack.c.b16 %v344, %v343
    %v360 = vpack.c.b16 %v346, %v345
    %v361 = vpack.c.b16 %v348, %v347
    %v362 = vpack.c.b16 %v350, %v349
    %v363 = vpack.c.b16 %v352, %v351
    %v364 = vpack.c.b16 %v354, %v353
    %v365 = vpack.c.b16 %v356, %v355
    %v366 = vpack.c.b16 %v358, %v357
    %375 = vmatpush.bf16.msra.mxu0 %v366
    %376 = vmatpush.bf16.msra.mxu0 %v365
    %377 = vmatpush.bf16.msra.mxu0 %v364
    %378 = vmatpush.bf16.msra.mxu0 %v363
    %379 = vmatpush.bf16.msra.mxu0 %v362
    %380 = vmatpush.bf16.msra.mxu0 %v361
    %381 = vmatpush.bf16.msra.mxu0 %v360
    %382 = vmatpush.bf16.msra.mxu0 %v359
    %383 = vmatmul.bf16.gmra.mxu0 %v306
    %v384 = vpop.f32.mrf.mxu0
    %v385 = vadd.f32 %v325, %v384
    %v386 = vpop.f32.mrf.mxu0
    %387 = vdwg.mxu0
    %v388 = vmax.f32 %v385, 0.0
    %v389 = vpack.c.bf16 %v388, %v388
    %v390 = vld [vmem:[#allocation8] sm:$0xf]
    %v391 = vld [vmem:[#allocation8 + $0x4] sm:$0xf]
    %v392 = vld [vmem:[#allocation8 + $0x8] sm:$0xf]
    %v393 = vld [vmem:[#allocation8 + $0xc] sm:$0xf]
    %v394 = vld [vmem:[#allocation8 + $0x10] sm:$0xf]
    %v395 = vld [vmem:[#allocation8 + $0x14] sm:$0xf]
    %v396 = vld [vmem:[#allocation8 + $0x18] sm:$0xf]
    %v397 = vld [vmem:[#allocation8 + $0x1c] sm:$0xf]
    %v398 = vld [vmem:[#allocation8 + $0x20] sm:$0xf]
    %v399 = vld [vmem:[#allocation8 + $0x24] sm:$0xf]
    %v400 = vld [vmem:[#allocation8 + $0x28] sm:$0xf]
    %v401 = vld [vmem:[#allocation8 + $0x2c] sm:$0xf]
    %v402 = vld [vmem:[#allocation8 + $0x30] sm:$0xf]
    %v403 = vld [vmem:[#allocation8 + $0x34] sm:$0xf]
    %v404 = vld [vmem:[#allocation8 + $0x38] sm:$0xf]
    %v405 = vld [vmem:[#allocation8 + $0x3c] sm:$0xf]
    %v406 = vld [vmem:[%s8] sm:$0x1]
    %v408 = vperm.slane %v406, 0
    %v426 = vunpack.c.l.b16 %v390
    %v427 = vunpack.c.l.b16 %v391
    %v428 = vunpack.c.l.b16 %v392
    %v429 = vunpack.c.l.b16 %v393
    %v430 = vunpack.c.l.b16 %v394
    %v431 = vunpack.c.l.b16 %v395
    %v432 = vunpack.c.l.b16 %v396
    %v433 = vunpack.c.l.b16 %v397
    %v434 = vunpack.c.l.b16 %v398
    %v435 = vunpack.c.l.b16 %v399
    %v436 = vunpack.c.l.b16 %v400
    %v437 = vunpack.c.l.b16 %v401
    %v438 = vunpack.c.l.b16 %v402
    %v439 = vunpack.c.l.b16 %v403
    %v440 = vunpack.c.l.b16 %v404
    %v441 = vunpack.c.l.b16 %v405
    %v442 = vpack.c.b16 %v427, %v426
    %v443 = vpack.c.b16 %v429, %v428
    %v444 = vpack.c.b16 %v431, %v430
    %v445 = vpack.c.b16 %v433, %v432
    %v446 = vpack.c.b16 %v435, %v434
    %v447 = vpack.c.b16 %v437, %v436
    %v448 = vpack.c.b16 %v439, %v438
    %v449 = vpack.c.b16 %v441, %v440
    %458 = vmatpush.bf16.msra.mxu0 %v449
    %459 = vmatpush.bf16.msra.mxu0 %v448
    %460 = vmatpush.bf16.msra.mxu0 %v447
    %461 = vmatpush.bf16.msra.mxu0 %v446
    %462 = vmatpush.bf16.msra.mxu0 %v445
    %463 = vmatpush.bf16.msra.mxu0 %v444
    %464 = vmatpush.bf16.msra.mxu0 %v443
    %465 = vmatpush.bf16.msra.mxu0 %v442
    %466 = vmatmul.bf16.gmra.mxu0 %v389
    %v467 = vpop.f32.mrf.mxu0
    %v468 = vadd.f32 %v408, %v467
    %v469 = vpop.f32.mrf.mxu0
    %470 = vdwg.mxu0
    %v471 = vmax.f32 %v468, 0.0
    %v472 = vpack.c.bf16 %v471, %v471
    %v473 = vld [vmem:[#allocation10] sm:$0xf]
    %v474 = vld [vmem:[#allocation10 + $0x4] sm:$0xf]
    %v475 = vld [vmem:[#allocation10 + $0x8] sm:$0xf]
    %v476 = vld [vmem:[#allocation10 + $0xc] sm:$0xf]
    %v477 = vld [vmem:[#allocation10 + $0x10] sm:$0xf]
    %v478 = vld [vmem:[#allocation10 + $0x14] sm:$0xf]
    %v479 = vld [vmem:[#allocation10 + $0x18] sm:$0xf]
    %v480 = vld [vmem:[#allocation10 + $0x1c] sm:$0xf]
    %v481 = vld [vmem:[#allocation10 + $0x20] sm:$0xf]
    %v482 = vld [vmem:[#allocation10 + $0x24] sm:$0xf]
    %v483 = vld [vmem:[#allocation10 + $0x28] sm:$0xf]
    %v484 = vld [vmem:[#allocation10 + $0x2c] sm:$0xf]
    %v485 = vld [vmem:[#allocation10 + $0x30] sm:$0xf]
    %v486 = vld [vmem:[#allocation10 + $0x34] sm:$0xf]
    %v487 = vld [vmem:[#allocation10 + $0x38] sm:$0xf]
    %v488 = vld [vmem:[#allocation10 + $0x3c] sm:$0xf]
    %v489 = vld [vmem:[%s10] sm:$0x1]
    %v491 = vperm.slane %v489, 0
    %v509 = vunpack.c.l.b16 %v473
    %v510 = vunpack.c.l.b16 %v474
    %v511 = vunpack.c.l.b16 %v475
    %v512 = vunpack.c.l.b16 %v476
    %v513 = vunpack.c.l.b16 %v477
    %v514 = vunpack.c.l.b16 %v478
    %v515 = vunpack.c.l.b16 %v479
    %v516 = vunpack.c.l.b16 %v480
    %v517 = vunpack.c.l.b16 %v481
    %v518 = vunpack.c.l.b16 %v482
    %v519 = vunpack.c.l.b16 %v483
    %v520 = vunpack.c.l.b16 %v484
    %v521 = vunpack.c.l.b16 %v485
    %v522 = vunpack.c.l.b16 %v486
    %v523 = vunpack.c.l.b16 %v487
    %v524 = vunpack.c.l.b16 %v488
    %v525 = vpack.c.b16 %v510, %v509
    %v526 = vpack.c.b16 %v512, %v511
    %v527 = vpack.c.b16 %v514, %v513
    %v528 = vpack.c.b16 %v516, %v515
    %v529 = vpack.c.b16 %v518, %v517
    %v530 = vpack.c.b16 %v520, %v519
    %v531 = vpack.c.b16 %v522, %v521
    %v532 = vpack.c.b16 %v524, %v523
    %541 = vmatpush.bf16.msra.mxu0 %v532
    %542 = vmatpush.bf16.msra.mxu0 %v531
    %543 = vmatpush.bf16.msra.mxu0 %v530
    %544 = vmatpush.bf16.msra.mxu0 %v529
    %545 = vmatpush.bf16.msra.mxu0 %v528
    %546 = vmatpush.bf16.msra.mxu0 %v527
    %547 = vmatpush.bf16.msra.mxu0 %v526
    %548 = vmatpush.bf16.msra.mxu0 %v525
    %549 = vmatmul.bf16.gmra.mxu0 %v472
    %v550 = vpop.f32.mrf.mxu0
    %v551 = vadd.f32 %v491, %v550
    %v552 = vpop.f32.mrf.mxu0
    %553 = vdwg.mxu0
    %v554 = vmax.f32 %v551, 0.0
    %v555 = vpack.c.bf16 %v554, %v554
    %v556 = vld [vmem:[#allocation11] sm:$0xf]
    %v557 = vld [vmem:[#allocation11 + $0x4] sm:$0xf]
    %v558 = vld [vmem:[#allocation11 + $0x8] sm:$0xf]
    %v559 = vld [vmem:[#allocation11 + $0xc] sm:$0xf]
    %v560 = vld [vmem:[#allocation11 + $0x10] sm:$0xf]
    %v561 = vld [vmem:[#allocation11 + $0x14] sm:$0xf]
    %v562 = vld [vmem:[#allocation11 + $0x18] sm:$0xf]
    %v563 = vld [vmem:[#allocation11 + $0x1c] sm:$0xf]
    %v564 = vld [vmem:[#allocation11 + $0x20] sm:$0xf]
    %v565 = vld [vmem:[#allocation11 + $0x24] sm:$0xf]
    %v566 = vld [vmem:[#allocation11 + $0x28] sm:$0xf]
    %v567 = vld [vmem:[#allocation11 + $0x2c] sm:$0xf]
    %v568 = vld [vmem:[#allocation11 + $0x30] sm:$0xf]
    %v569 = vld [vmem:[#allocation11 + $0x34] sm:$0xf]
    %v570 = vld [vmem:[#allocation11 + $0x38] sm:$0xf]
    %v571 = vld [vmem:[#allocation11 + $0x3c] sm:$0xf]
    %v572 = vld [vmem:[%s12] sm:$0x1]
    %v574 = vperm.slane %v572, 0
    %v592 = vunpack.c.l.b16 %v556
    %v593 = vunpack.c.l.b16 %v557
    %v594 = vunpack.c.l.b16 %v558
    %v595 = vunpack.c.l.b16 %v559
    %v596 = vunpack.c.l.b16 %v560
    %v597 = vunpack.c.l.b16 %v561
    %v598 = vunpack.c.l.b16 %v562
    %v599 = vunpack.c.l.b16 %v563
    %v600 = vunpack.c.l.b16 %v564
    %v601 = vunpack.c.l.b16 %v565
    %v602 = vunpack.c.l.b16 %v566
    %v603 = vunpack.c.l.b16 %v567
    %v604 = vunpack.c.l.b16 %v568
    %v605 = vunpack.c.l.b16 %v569
    %v606 = vunpack.c.l.b16 %v570
    %v607 = vunpack.c.l.b16 %v571
    %v608 = vpack.c.b16 %v593, %v592
    %v609 = vpack.c.b16 %v595, %v594
    %v610 = vpack.c.b16 %v597, %v596
    %v611 = vpack.c.b16 %v599, %v598
    %v612 = vpack.c.b16 %v601, %v600
    %v613 = vpack.c.b16 %v603, %v602
    %v614 = vpack.c.b16 %v605, %v604
    %v615 = vpack.c.b16 %v607, %v606
    %624 = vmatpush.bf16.msra.mxu0 %v615
    %625 = vmatpush.bf16.msra.mxu0 %v614
    %626 = vmatpush.bf16.msra.mxu0 %v613
    %627 = vmatpush.bf16.msra.mxu0 %v612
    %628 = vmatpush.bf16.msra.mxu0 %v611
    %629 = vmatpush.bf16.msra.mxu0 %v610
    %630 = vmatpush.bf16.msra.mxu0 %v609
    %631 = vmatpush.bf16.msra.mxu0 %v608
    %632 = vmatmul.bf16.gmra.mxu0 %v555
    %v633 = vpop.f32.mrf.mxu0
    %v634 = vadd.f32 %v574, %v633
    %v635 = vpop.f32.mrf.mxu0
    %636 = vdwg.mxu0
    %v637 = vmax.f32 %v634, 0.0
    %638 = vst [vmem:[#allocation13] sm:$0xff] %v637
    // Predicated region
    $region78: #{autoencoder_forward.1} parent=1 // pred_check
      _
    $region79: #{autoencoder_forward.1} parent=1 // pred_check_branch
      %640 = sbr.rel (0) target = $region81
    $region80: #{autoencoder_forward.1} parent=1 // pred_region
      %642 = vsyncadd [#allocation4], 0
      %s644 = sshll.u32 [#allocation13], 4
      %s645 = int_to_ptr.vmem [resolvable:$true] %s644
      %s646 = sshll.u32 %s13, 4
      %s647 = int_to_ptr.hbm [resolvable:$true] %s646
      %649 = dma.vmem_to_hbm [thread:$0]  %s645, 128, %s647, [#allocation4]
    $region81: #{autoencoder_forward.1} parent=1 // pred_fallthru
      _
    // Predicated region
    $region82: #{autoencoder_forward.1} parent=1 // pred_check
      _
    $region83: #{autoencoder_forward.1} parent=1 // pred_check_branch
      %651 = sbr.rel (0) target = $region85
    $region84: #{autoencoder_forward.1} parent=1 // pred_region
      %653 = dma.done [#allocation4], 128
    $region85: #{autoencoder_forward.1} parent=1 // pred_fallthru
      _
    %654 = vsyncpa [#allocation3], 1
    %655 = vsyncpa [#allocation6], 1
    %656 = vsyncpa [#allocation9], 1
    %657 = vsyncpa [#allocation12], 1
    %658 = vsyncpa [#allocation4], 1

</llo_original>
